<compile_context>
chip_gen: v7x
topology: tpu7x:2x2x1
jax: 0.10.0
libtpu: 0.0.40
codegen_flags: <defaults>
</compile_context>

<pallas_src>
import jax
import jax.numpy as jnp
from jax.experimental import pallas as pl
from jax.experimental.pallas import tpu as pltpu


def _round_up(x, m):
    return (x + m - 1) // m * m


def _choose_row_tile(oh, s, target_lanes=2048):
    """Largest divisor of `oh` whose flat tile width (tr * s) <= target_lanes."""
    cap = max(1, target_lanes // s)
    tr = 1
    for d in range(1, oh + 1):
        if oh % d == 0 and d <= cap:
            tr = d
    return tr


def _make_kernel(K, cin, s, trs):
    """One row-tile: assemble im2col operand in VMEM, single deep MXU matmul."""

    def kernel(x_ref, w_ref, b_ref, o_ref, xs_ref):
        # x_ref : (1, 1, Cin, (TR+K)*S)  flat row tile (K-1 row halo + spill row)
        # w_ref : (Cout, K*K*Cin)        weights, (dy, dx, ci) flattened
        # b_ref : (Cout, 1)              f32 bias
        # o_ref : (1, 1, Cout, TR*S)     lane-dense flat output tile
        # xs_ref: (K*K*Cin, TR*S)        VMEM scratch: stacked (dy,dx) operands
        for dy in range(K):              # static unroll; K is small (3, 5, ...)
            base = dy * s                # 128-aligned (s % 128 == 0)
            for dx in range(K):
                p = dy * K + dx
                xs_ref[p * cin:(p + 1) * cin, :] = (
                    x_ref[0, 0, :, base + dx: base + dx + trs])
        acc = jnp.dot(w_ref[...], xs_ref[...],
                      preferred_element_type=jnp.float32)     # (Cout, TR*S)
        o_ref[0, 0] = (acc + b_ref[...]).astype(o_ref.dtype)

    return kernel


def upsample_conv2d(x, weight, bias=None, *, kernel_size, factor=None,
                    mode="nearest", compute_dtype=jnp.bfloat16):
    """Pallas forward of cflearn UpsampleConv2d (default config): nearest
    upsample by `factor`, then conv2d with 'same' padding, stride=1,
    dilation=1, groups=1, optional bias. bf16 compute / f32 accumulation."""
    if mode != "nearest":
        raise NotImplementedError("only mode='nearest' is implemented")
    K = kernel_size
    if K % 2 != 1:
        raise NotImplementedError("only odd kernel_size ('same' pad) supported")

    N, Cin, H, W = x.shape
    Cout = weight.shape[0]
    assert weight.shape == (Cout, Cin, K, K), weight.shape
    pad = K // 2

    # 1) Nearest-neighbor upsample (integer factor) — wrapper-side data movement.
    if factor is not None:
        f = int(round(factor))
        if f != factor:
            raise NotImplementedError("only integer nearest factors supported")
        if f != 1:
            x = jnp.repeat(jnp.repeat(x, f, axis=2), f, axis=3)
    OH, OW = x.shape[2], x.shape[3]

    # 2) Lane-aligned padded layout: row stride S (multiple of 128), conv halo
    #    pad on rows/cols, plus one extra bottom row so the last tile's (dy,dx)
    #    windows stay inside the flat block.
    S = _round_up(OW + K - 1, 128)
    xp = jnp.pad(x, ((0, 0), (0, 0), (pad, K - pad), (pad, S - OW - pad)))
    # xp: (N, Cin, OH + K, S), data at xp[:, :, pad + y, pad + col]

    # 3) Overlapping row tiles (halo), rows flattened into the lane axis.
    TR = _choose_row_tile(OH, S)
    T = OH // TR
    row_idx = jnp.arange(T)[:, None] * TR + jnp.arange(TR + K)[None, :]
    xt = xp[:, :, row_idx, :]                          # (N, Cin, T, TR+K, S)
    xt = xt.transpose(0, 2, 1, 3, 4).reshape(N, T, Cin, (TR + K) * S)
    xt = xt.astype(compute_dtype)

    # 4) Weights regrouped to (Cout, (dy, dx, ci)); bias in f32.
    w2 = jnp.transpose(weight, (0, 2, 3, 1)).reshape(Cout, K * K * Cin)
    w2 = w2.astype(compute_dtype)
    if bias is None:
        bias = jnp.zeros((Cout,), jnp.float32)
    b2 = bias.reshape(Cout, 1).astype(jnp.float32)

    TRS = TR * S
    kernel = _make_kernel(K, Cin, S, TRS)
    out_flat = pl.pallas_call(
        kernel,
        out_shape=jax.ShapeDtypeStruct((N, T, Cout, TRS), x.dtype),
        grid=(N, T),
        in_specs=[
            pl.BlockSpec((1, 1, Cin, (TR + K) * S), lambda n, t: (n, t, 0, 0)),
            pl.BlockSpec((Cout, K * K * Cin), lambda n, t: (0, 0)),
            pl.BlockSpec((Cout, 1), lambda n, t: (0, 0)),
        ],
        out_specs=pl.BlockSpec((1, 1, Cout, TRS), lambda n, t: (n, t, 0, 0)),
        scratch_shapes=[pltpu.VMEM((K * K * Cin, TRS), compute_dtype)],
        compiler_params=pltpu.CompilerParams(
            dimension_semantics=("parallel", "parallel")),
    )(xt, w2, b2)

    # 5) Trim padded columns and stitch row tiles back into (N, Cout, OH, OW).
    out = out_flat.reshape(N, T, Cout, TR, S)[..., :OW]
    out = out.transpose(0, 2, 1, 3, 4).reshape(N, Cout, OH, OW)
    return out


def _reference(x, weight, bias, *, kernel_size, factor):
    """Pure-JAX reference: nearest upsample + lax conv (NCHW / OIHW)."""
    if factor is not None:
        f = int(round(factor))
        if f != 1:
            x = jnp.repeat(jnp.repeat(x, f, axis=2), f, axis=3)
    p = kernel_size // 2
    out = jax.lax.conv_general_dilated(
        x, weight, window_strides=(1, 1), padding=((p, p), (p, p)),
        dimension_numbers=("NCHW", "OIHW", "NCHW"),
        precision=jax.lax.Precision.HIGHEST)
    return out + bias[None, :, None, None]


if __name__ == "__main__":
    key = jax.random.PRNGKey(0)
    kx, kw, kb = jax.random.split(key, 3)

    N, Cin, H, W = 2, 4, 16, 16
    Cout, K = 8, 3
    factor = 2.0

    x = jax.random.normal(kx, (N, Cin, H, W), dtype=jnp.float32)
    weight = jax.random.normal(kw, (Cout, Cin, K, K), dtype=jnp.float32) * 0.1
    bias = jax.random.normal(kb, (Cout,), dtype=jnp.float32) * 0.1

    out = upsample_conv2d(x, weight, bias, kernel_size=K, factor=factor)
    out = jax.block_until_ready(out)

    # The kernel computes bf16 x bf16 products (exact in f32) with f32
    # accumulation, so compare against the reference on bf16-rounded inputs.
    xb = x.astype(jnp.bfloat16).astype(jnp.float32)
    wb = weight.astype(jnp.bfloat16).astype(jnp.float32)
    ref = _reference(xb, wb, bias, kernel_size=K, factor=factor)

    assert out.shape == (N, Cout, int(H * factor), int(W * factor)), out.shape
    max_err = float(jnp.max(jnp.abs(out - ref)))
    assert jnp.allclose(out, ref, atol=2e-3, rtol=2e-3), (
        f"mismatch vs reference, max abs err = {max_err}")

    print("KERNEL_OK")
</pallas_src>

<mosaic_0001>
module attributes {stable_mosaic.version = 11 : i64} {
  func.func @kernel(%arg0: i32, %arg1: i32, %arg2: memref<1x1x4x2432xbf16, #tpu.memory_space<vmem>>, %arg3: memref<8x36xbf16, #tpu.memory_space<vmem>>, %arg4: memref<8x1xf32, #tpu.memory_space<vmem>>, %arg5: memref<1x1x8x2048xf32, #tpu.memory_space<vmem>>, %arg6: memref<36x2048xbf16, #tpu.memory_space<vmem>>) attributes {dimension_semantics = [#tpu.dimension_semantics<parallel>, #tpu.dimension_semantics<parallel>], iteration_bounds = array<i64: 2, 2>, scalar_prefetch = 0 : i64, scratch_operands = 1 : i64, tpu.core_type = #tpu.core_type<tc>, window_params = [{transform_indices = @transform_0, window_bounds = array<i64: 1, 1, 4, 2432>}, {pipeline_mode = #tpu.pipeline_mode<synchronous>, transform_indices = @transform_1, window_bounds = array<i64: 8, 36>}, {pipeline_mode = #tpu.pipeline_mode<synchronous>, transform_indices = @transform_2, window_bounds = array<i64: 8, 1>}, {transform_indices = @transform_3, window_bounds = array<i64: 1, 1, 8, 2048>}]} {
    %c0 = arith.constant 0 : index
    %c0_0 = arith.constant 0 : index
    %c0_1 = arith.constant 0 : index
    %c0_2 = arith.constant 0 : index
    %0 = vector.load %arg2[%c0, %c0_0, %c0_1, %c0_2] : memref<1x1x4x2432xbf16, #tpu.memory_space<vmem>>, vector<1x1x4x2048xbf16>
    %1 = vector.shape_cast %0 : vector<1x1x4x2048xbf16> to vector<4x2048xbf16>
    %c0_3 = arith.constant 0 : index
    %c0_4 = arith.constant 0 : index
    %2 = vector.load %arg6[%c0_3, %c0_4] : memref<36x2048xbf16, #tpu.memory_space<vmem>>, vector<4x2048xbf16>
    tpu.vector_store %arg6[%c0_3, %c0_4], %1 {strides = array<i32>} : memref<36x2048xbf16, #tpu.memory_space<vmem>>, vector<4x2048xbf16>,
    %c0_5 = arith.constant 0 : index
    %c0_6 = arith.constant 0 : index
    %c0_7 = arith.constant 0 : index
    %c1 = arith.constant 1 : index
    %3 = vector.load %arg2[%c0_5, %c0_6, %c0_7, %c1] : memref<1x1x4x2432xbf16, #tpu.memory_space<vmem>>, vector<1x1x4x2048xbf16>
    %4 = vector.shape_cast %3 : vector<1x1x4x2048xbf16> to vector<4x2048xbf16>
    %c4 = arith.constant 4 : index
    %c0_8 = arith.constant 0 : index
    %5 = vector.load %arg6[%c4, %c0_8] : memref<36x2048xbf16, #tpu.memory_space<vmem>>, vector<4x2048xbf16>
    tpu.vector_store %arg6[%c4, %c0_8], %4 {strides = array<i32>} : memref<36x2048xbf16, #tpu.memory_space<vmem>>, vector<4x2048xbf16>,
    %c0_9 = arith.constant 0 : index
    %c0_10 = arith.constant 0 : index
    %c0_11 = arith.constant 0 : index
    %c2 = arith.constant 2 : index
    %6 = vector.load %arg2[%c0_9, %c0_10, %c0_11, %c2] : memref<1x1x4x2432xbf16, #tpu.memory_space<vmem>>, vector<1x1x4x2048xbf16>
    %7 = vector.shape_cast %6 : vector<1x1x4x2048xbf16> to vector<4x2048xbf16>
    %c8 = arith.constant 8 : index
    %c0_12 = arith.constant 0 : index
    %8 = vector.load %arg6[%c8, %c0_12] : memref<36x2048xbf16, #tpu.memory_space<vmem>>, vector<4x2048xbf16>
    tpu.vector_store %arg6[%c8, %c0_12], %7 {strides = array<i32>} : memref<36x2048xbf16, #tpu.memory_space<vmem>>, vector<4x2048xbf16>,
    %c0_13 = arith.constant 0 : index
    %c0_14 = arith.constant 0 : index
    %c0_15 = arith.constant 0 : index
    %c128 = arith.constant 128 : index
    %9 = vector.load %arg2[%c0_13, %c0_14, %c0_15, %c128] : memref<1x1x4x2432xbf16, #tpu.memory_space<vmem>>, vector<1x1x4x2048xbf16>
    %10 = vector.shape_cast %9 : vector<1x1x4x2048xbf16> to vector<4x2048xbf16>
    %c12 = arith.constant 12 : index
    %c0_16 = arith.constant 0 : index
    %11 = vector.load %arg6[%c12, %c0_16] : memref<36x2048xbf16, #tpu.memory_space<vmem>>, vector<4x2048xbf16>
    tpu.vector_store %arg6[%c12, %c0_16], %10 {strides = array<i32>} : memref<36x2048xbf16, #tpu.memory_space<vmem>>, vector<4x2048xbf16>,
    %c0_17 = arith.constant 0 : index
    %c0_18 = arith.constant 0 : index
    %c0_19 = arith.constant 0 : index
    %c129 = arith.constant 129 : index
    %12 = vector.load %arg2[%c0_17, %c0_18, %c0_19, %c129] : memref<1x1x4x2432xbf16, #tpu.memory_space<vmem>>, vector<1x1x4x2048xbf16>
    %13 = vector.shape_cast %12 : vector<1x1x4x2048xbf16> to vector<4x2048xbf16>
    %c16 = arith.constant 16 : index
    %c0_20 = arith.constant 0 : index
    %14 = vector.load %arg6[%c16, %c0_20] : memref<36x2048xbf16, #tpu.memory_space<vmem>>, vector<4x2048xbf16>
    tpu.vector_store %arg6[%c16, %c0_20], %13 {strides = array<i32>} : memref<36x2048xbf16, #tpu.memory_space<vmem>>, vector<4x2048xbf16>,
    %c0_21 = arith.constant 0 : index
    %c0_22 = arith.constant 0 : index
    %c0_23 = arith.constant 0 : index
    %c130 = arith.constant 130 : index
    %15 = vector.load %arg2[%c0_21, %c0_22, %c0_23, %c130] : memref<1x1x4x2432xbf16, #tpu.memory_space<vmem>>, vector<1x1x4x2048xbf16>
    %16 = vector.shape_cast %15 : vector<1x1x4x2048xbf16> to vector<4x2048xbf16>
    %c20 = arith.constant 20 : index
    %c0_24 = arith.constant 0 : index
    %17 = vector.load %arg6[%c20, %c0_24] : memref<36x2048xbf16, #tpu.memory_space<vmem>>, vector<4x2048xbf16>
    tpu.vector_store %arg6[%c20, %c0_24], %16 {strides = array<i32>} : memref<36x2048xbf16, #tpu.memory_space<vmem>>, vector<4x2048xbf16>,
    %c0_25 = arith.constant 0 : index
    %c0_26 = arith.constant 0 : index
    %c0_27 = arith.constant 0 : index
    %c256 = arith.constant 256 : index
    %18 = vector.load %arg2[%c0_25, %c0_26, %c0_27, %c256] : memref<1x1x4x2432xbf16, #tpu.memory_space<vmem>>, vector<1x1x4x2048xbf16>
    %19 = vector.shape_cast %18 : vector<1x1x4x2048xbf16> to vector<4x2048xbf16>
    %c24 = arith.constant 24 : index
    %c0_28 = arith.constant 0 : index
    %20 = vector.load %arg6[%c24, %c0_28] : memref<36x2048xbf16, #tpu.memory_space<vmem>>, vector<4x2048xbf16>
    tpu.vector_store %arg6[%c24, %c0_28], %19 {strides = array<i32>} : memref<36x2048xbf16, #tpu.memory_space<vmem>>, vector<4x2048xbf16>,
    %c0_29 = arith.constant 0 : index
    %c0_30 = arith.constant 0 : index
    %c0_31 = arith.constant 0 : index
    %c257 = arith.constant 257 : index
    %21 = vector.load %arg2[%c0_29, %c0_30, %c0_31, %c257] : memref<1x1x4x2432xbf16, #tpu.memory_space<vmem>>, vector<1x1x4x2048xbf16>
    %22 = vector.shape_cast %21 : vector<1x1x4x2048xbf16> to vector<4x2048xbf16>
    %c28 = arith.constant 28 : index
    %c0_32 = arith.constant 0 : index
    %23 = vector.load %arg6[%c28, %c0_32] : memref<36x2048xbf16, #tpu.memory_space<vmem>>, vector<4x2048xbf16>
    tpu.vector_store %arg6[%c28, %c0_32], %22 {strides = array<i32>} : memref<36x2048xbf16, #tpu.memory_space<vmem>>, vector<4x2048xbf16>,
    %c0_33 = arith.constant 0 : index
    %c0_34 = arith.constant 0 : index
    %c0_35 = arith.constant 0 : index
    %c258 = arith.constant 258 : index
    %24 = vector.load %arg2[%c0_33, %c0_34, %c0_35, %c258] : memref<1x1x4x2432xbf16, #tpu.memory_space<vmem>>, vector<1x1x4x2048xbf16>
    %25 = vector.shape_cast %24 : vector<1x1x4x2048xbf16> to vector<4x2048xbf16>
    %c32 = arith.constant 32 : index
    %c0_36 = arith.constant 0 : index
    %26 = vector.load %arg6[%c32, %c0_36] : memref<36x2048xbf16, #tpu.memory_space<vmem>>, vector<4x2048xbf16>
    tpu.vector_store %arg6[%c32, %c0_36], %25 {strides = array<i32>} : memref<36x2048xbf16, #tpu.memory_space<vmem>>, vector<4x2048xbf16>,
    %c0_37 = arith.constant 0 : index
    %c0_38 = arith.constant 0 : index
    %27 = vector.load %arg3[%c0_37, %c0_38] : memref<8x36xbf16, #tpu.memory_space<vmem>>, vector<8x36xbf16>
    %c0_39 = arith.constant 0 : index
    %c0_40 = arith.constant 0 : index
    %28 = vector.load %arg6[%c0_39, %c0_40] : memref<36x2048xbf16, #tpu.memory_space<vmem>>, vector<36x2048xbf16>
    %cst = arith.constant dense<0.000000e+00> : vector<8x2048xf32>
    %29 = tpu.matmul %27, %28, %cst {dimension_numbers = #tpu.dot_dimension_numbers<[1], [0], [0], [1], [0, 0, 1, 1], [], []>} : vector<8x36xbf16>, vector<36x2048xbf16>, vector<8x2048xf32> -> vector<8x2048xf32>
    %c0_41 = arith.constant 0 : index
    %c0_42 = arith.constant 0 : index
    %30 = vector.load %arg4[%c0_41, %c0_42] : memref<8x1xf32, #tpu.memory_space<vmem>>, vector<8x1xf32>
    %31 = vector.broadcast %30 : vector<8x1xf32> to vector<8x2048xf32>
    %32 = arith.addf %29, %31 : vector<8x2048xf32>
    %c0_43 = arith.constant 0 : index
    %c0_44 = arith.constant 0 : index
    %c0_45 = arith.constant 0 : index
    %c0_46 = arith.constant 0 : index
    %33 = vector.load %arg5[%c0_43, %c0_44, %c0_45, %c0_46] : memref<1x1x8x2048xf32, #tpu.memory_space<vmem>>, vector<1x1x8x2048xf32>
    %34 = vector.shape_cast %33 : vector<1x1x8x2048xf32> to vector<8x2048xf32>
    %35 = vector.shape_cast %32 : vector<8x2048xf32> to vector<1x1x8x2048xf32>
    tpu.vector_store %arg5[%c0_43, %c0_44, %c0_45, %c0_46], %35 {strides = array<i32>} : memref<1x1x8x2048xf32, #tpu.memory_space<vmem>>, vector<1x1x8x2048xf32>,
    return
  }
  func.func @transform_0(%arg0: i32, %arg1: i32) -> (i32, i32, i32, i32) {
    %c0_i32 = arith.constant 0 : i32
    %c0_i32_0 = arith.constant 0 : i32
    %c0_i32_1 = arith.constant 0 : i32
    return %arg0, %arg1, %c0_i32, %c0_i32_0 : i32, i32, i32, i32
  }
  func.func @transform_1(%arg0: i32, %arg1: i32) -> (i32, i32) {
    %c0_i32 = arith.constant 0 : i32
    %c0_i32_0 = arith.constant 0 : i32
    %c0_i32_1 = arith.constant 0 : i32
    return %c0_i32, %c0_i32_0 : i32, i32
  }
  func.func @transform_2(%arg0: i32, %arg1: i32) -> (i32, i32) {
    %c0_i32 = arith.constant 0 : i32
    %c0_i32_0 = arith.constant 0 : i32
    %c0_i32_1 = arith.constant 0 : i32
    return %c0_i32, %c0_i32_0 : i32, i32
  }
  func.func @transform_3(%arg0: i32, %arg1: i32) -> (i32, i32, i32, i32) {
    %c0_i32 = arith.constant 0 : i32
    %c0_i32_0 = arith.constant 0 : i32
    %c0_i32_1 = arith.constant 0 : i32
    return %arg0, %arg1, %c0_i32, %c0_i32_0 : i32, i32, i32, i32
  }
}

</mosaic_0001>

<llo_original>
// kernel: tpu_custom_call.1
$region0: #{tpu_custom_call.1}
  #allocation0 [shape = 'u32[]', space=smem, size = 0x4, offset = 0x4, fixed_abs, tag = 'smem constant byte address 0x4 - core index']
  #allocation1 [shape = 'u32[144,128]{1,0:T(1,128)}', space=vmem, size = 0x12000, scoped, tag = 'internal scratch']
  #allocation2 [shape = 'bf16[36,2048]{1,0:T(8,128)(2,1)}', space=vmem, size = 0x28000, scoped, tag = 'scratch operand']
  %s0 = inlined_call_operand.hbm [shape: bf16[2,2,4,2432], index: 0, kind: input, shape index: {}]
  %s1 = inlined_call_operand.vmem [shape: bf16[8,36], index: 1, kind: input, shape index: {}]
  %s2 = inlined_call_operand.vmem [shape: f32[8,1], index: 2, kind: input, shape index: {}]
  %s3 = inlined_call_operand.hbm [shape: f32[2,2,8,2048], index: 3, kind: output, shape index: {}]
  %s4 = sld [smem:[#allocation0]]
  $region49: #{tpu_custom_call.1} parent=0
    _
  %s6 = ssub.s32 1, %s4
  %s7 = scalar_select 0, %s6, %s4
  $region1: #{tpu_custom_call.1} parent=0
    #allocation3 [shape = 'u8[38912]{0}', space=vmem, size = 0x9800, scoped, tag = 'input window, operand 0']
    #allocation4 [shape = 's32[2]{0}', space=sflag, size = 0x8, scoped, tag = 'scoped memory for tpu_custom_call.1']
    #allocation5 [shape = 's32[2]{0}', space=sflag, size = 0x8, scoped, tag = 'scoped memory for tpu_custom_call.1']
    #allocation6 [shape = 'u8[131072]{0}', space=vmem, size = 0x20000, scoped, tag = 'output window, operand 0']
    %8 = vsyncpa [#allocation4], 0
    %s9 = scalar_lea.sflag [#allocation4], 1
    %10 = vsyncpa %s9, 0
    %11 = vsyncpa [#allocation5], 0
    %s12 = scalar_lea.sflag [#allocation5], 1
    %13 = vsyncpa %s12, 0
    loop: start=0, step=1, limit=6
    $region2: #{tpu_custom_call.1} parent=1 // loop_pre_header
      _
    $region3: #{tpu_custom_call.1} parent=1 // loop_header
      %s15 = sphi 0, %s19
      %p16 = scmp.ge.s32.totalorder %s15, 6
      %s22 = sphi 0, %s34
      %s23 = sphi 0, %s30
      %s24 = sphi 0, %s22
      %s25 = sphi 0, %s23
      %s26 = sphi 0, %s24
      %s27 = sphi 0, %s25
      %s39 = sphi 0, %s41
      %s42 = sphi 0, %s39
      %s43 = sphi 0, %s42
      %s59 = sphi 0, %s43
      %s63 = sphi 0, %s63
      %s65 = sphi 0, %s63
      %s66 = sphi 0, %s65
      %s80 = sphi 0, %s66
      %s84 = sphi 0, %s84
      %s86 = sphi 0, %s84
      %s87 = sphi 0, %s86
      %s101 = sphi 0, %s87
      %s109 = sphi 0, %s111
      %s112 = sphi 0, %s109
      %s113 = sphi 0, %s112
      %s129 = sphi 0, %s113
    $region4: #{tpu_custom_call.1} parent=1 // loop_header_branch
      %18 = sbr.rel (%p16) target = $region8
    $region5: #{tpu_custom_call.1} parent=1 // loop_body
      %s20 = ssub.s32 %s15, 1
      %s21 = ssub.s32 %s15, 2
      %s28 = sadd.s32 1, %s23
      %p29 = scmp.ge.s32.totalorder %s28, 2
      %s30 = scalar_select %p29, 0, %s28
      %s31 = sadd.s32 1, %s22
      %s32 = scalar_select %p29, %s31, %s22
      %p33 = scmp.ge.s32.totalorder %s32, 2
      %s34 = scalar_select %p33, 0, %s32
      %s35 = ssub.s32 %s22, %s34
      %s36 = ssub.s32 %s23, %s30
      %s37 = sor.u32 %s35, %s36
      %p38 = scmp.eq.s32.totalorder %s37, 0
      %s40 = sadd.s32 %s39, 1
      %s41 = scalar_select %p38, %s39, %s40
      %p44 = pneg %p38
      %p45 = scmp.eq.s32.totalorder %s15, 3
      %p46 = por %p44, %p45
      %p47 = scmp.ne.s32.totalorder %s39, %s42
      %p48 = scmp.eq.s32.totalorder %s15, 0
      %p49 = por %p47, %p48
      %p50 = scmp.ne.s32.totalorder %s39, %s42
      %p51 = scmp.eq.s32.totalorder %s20, 3
      %p52 = por %p50, %p51
      %p53 = scmp.ne.s32.totalorder %s42, %s43
      %p54 = scmp.eq.s32.totalorder %s20, 0
      %p55 = por %p53, %p54
      %p56 = scmp.ne.s32.totalorder %s42, %s43
      %p57 = scmp.eq.s32.totalorder %s21, 3
      %p58 = por %p56, %p57
      %p60 = scmp.ne.s32.totalorder %s43, %s59
      %p61 = scmp.eq.s32.totalorder %s21, 0
      %p62 = por %p60, %p61
      %s64 = sadd.s32 %s63, 1
      %p67 = scmp.eq.s32.totalorder %s15, 3
      %p68 = scmp.ne.s32.totalorder %s63, %s65
      %p69 = scmp.eq.s32.totalorder %s15, 0
      %p70 = por %p68, %p69
      %p71 = scmp.ne.s32.totalorder %s63, %s65
      %p72 = scmp.eq.s32.totalorder %s20, 3
      %p73 = por %p71, %p72
      %p74 = scmp.ne.s32.totalorder %s65, %s66
      %p75 = scmp.eq.s32.totalorder %s20, 0
      %p76 = por %p74, %p75
      %p77 = scmp.ne.s32.totalorder %s65, %s66
      %p78 = scmp.eq.s32.totalorder %s21, 3
      %p79 = por %p77, %p78
      %p81 = scmp.ne.s32.totalorder %s66, %s80
      %p82 = scmp.eq.s32.totalorder %s21, 0
      %p83 = por %p81, %p82
      %s85 = sadd.s32 %s84, 1
      %p88 = scmp.eq.s32.totalorder %s15, 3
      %p89 = scmp.ne.s32.totalorder %s84, %s86
      %p90 = scmp.eq.s32.totalorder %s15, 0
      %p91 = por %p89, %p90
      %p92 = scmp.ne.s32.totalorder %s84, %s86
      %p93 = scmp.eq.s32.totalorder %s20, 3
      %p94 = por %p92, %p93
      %p95 = scmp.ne.s32.totalorder %s86, %s87
      %p96 = scmp.eq.s32.totalorder %s20, 0
      %p97 = por %p95, %p96
      %p98 = scmp.ne.s32.totalorder %s86, %s87
      %p99 = scmp.eq.s32.totalorder %s21, 3
      %p100 = por %p98, %p99
      %p102 = scmp.ne.s32.totalorder %s87, %s101
      %p103 = scmp.eq.s32.totalorder %s21, 0
      %p104 = por %p102, %p103
      %s105 = ssub.s32 %s22, %s34
      %s106 = ssub.s32 %s23, %s30
      %s107 = sor.u32 %s105, %s106
      %p108 = scmp.eq.s32.totalorder %s107, 0
      %s110 = sadd.s32 %s109, 1
      %s111 = scalar_select %p108, %s109, %s110
      %p114 = pneg %p108
      %p115 = scmp.eq.s32.totalorder %s15, 3
      %p116 = por %p114, %p115
      %p117 = scmp.ne.s32.totalorder %s109, %s112
      %p118 = scmp.eq.s32.totalorder %s15, 0
      %p119 = por %p117, %p118
      %p120 = scmp.ne.s32.totalorder %s109, %s112
      %p121 = scmp.eq.s32.totalorder %s20, 3
      %p122 = por %p120, %p121
      %p123 = scmp.ne.s32.totalorder %s112, %s113
      %p124 = scmp.eq.s32.totalorder %s20, 0
      %p125 = por %p123, %p124
      %p126 = scmp.ne.s32.totalorder %s112, %s113
      %p127 = scmp.eq.s32.totalorder %s21, 3
      %p128 = por %p126, %p127
      %p130 = scmp.ne.s32.totalorder %s113, %s129
      %p131 = scmp.eq.s32.totalorder %s21, 0
      %p132 = por %p130, %p131
      %p133 = scmp.le.s32.totalorder 1, %s15
      %p134 = scmp.lt.s32.totalorder %s15, 5
      %p135 = pnand %p133, %p134
      %p136 = pneg %p135
      // Predicated region
      $region9: #{tpu_custom_call.1} parent=5 // pred_check
        _
      $region10: #{tpu_custom_call.1} parent=5 // pred_check_branch
        %138 = sbr.rel (%p135) target = $region12
      $region11: #{tpu_custom_call.1} parent=5 // pred_region
        %s139 = ssub.s32 %s15, 1
        // Predicated region
        $region13: #{tpu_custom_call.1} parent=11 // pred_check
          %p140 = pneg %p76
        $region14: #{tpu_custom_call.1} parent=11 // pred_check_branch
          %142 = sbr.rel (%p140) target = $region16
        $region15: #{tpu_custom_call.1} parent=11 // pred_region
          _
        $region16: #{tpu_custom_call.1} parent=11 // pred_fallthru
          _
        // Predicated region
        $region17: #{tpu_custom_call.1} parent=11 // pred_check
          %p143 = pneg %p97
        $region18: #{tpu_custom_call.1} parent=11 // pred_check_branch
          %145 = sbr.rel (%p143) target = $region20
        $region19: #{tpu_custom_call.1} parent=11 // pred_region
          _
        $region20: #{tpu_custom_call.1} parent=11 // pred_fallthru
          _
      $region12: #{tpu_custom_call.1} parent=5 // pred_fallthru
        _
      %p146 = scmp.lt.s32.totalorder %s15, 4
      // Predicated region
      $region21: #{tpu_custom_call.1} parent=5 // pred_check
        %p147 = pneg %p146
      $region22: #{tpu_custom_call.1} parent=5 // pred_check_branch
        %149 = sbr.rel (%p147) target = $region24
      $region23: #{tpu_custom_call.1} parent=5 // pred_region
        // Predicated region
        $region25: #{tpu_custom_call.1} parent=23 // pred_check
          %p150 = pneg %p49
        $region26: #{tpu_custom_call.1} parent=23 // pred_check_branch
          %152 = sbr.rel (%p150) target = $region28
        $region27: #{tpu_custom_call.1} parent=23 // pred_region
          %s153 = sand.u32 %s39, 1
          %s154 = scalar_lea.sflag [#allocation4], %s153
          %s155 = sand.u32 %s39, 1
          %s156 = smul.addr %s155, 38
          %s157 = scalar_lea.vmem [#allocation3], %s156
          %s159 = ssub.s32 608, 608
          %160 = vsyncadd %s154, %s159
          %s161 = smul.addr %s23, 19
          %s162 = smul.addr %s22, 38
          %s163 = sadd.s32 %s161, %s162
          %s164 = smul.addr %s163, 32
          %s165 = scalar_lea.hbm %s0, %s164
          %s167 = sshll.u32 %s157, 4
          %s168 = int_to_ptr.vmem [resolvable:$true] %s167
          %170 = dma.hbm_to_vmem [thread:$0]  %s165, 608, %s168, %s154
        $region28: #{tpu_custom_call.1} parent=23 // pred_fallthru
          _
      $region24: #{tpu_custom_call.1} parent=5 // pred_fallthru
        _
      %p171 = scmp.le.s32.totalorder 1, %s15
      %p172 = scmp.lt.s32.totalorder %s15, 5
      %p173 = pnand %p171, %p172
      %p174 = pneg %p173
      // Predicated region
      $region29: #{tpu_custom_call.1} parent=5 // pred_check
        _
      $region30: #{tpu_custom_call.1} parent=5 // pred_check_branch
        %176 = sbr.rel (%p173) target = $region32
      $region31: #{tpu_custom_call.1} parent=5 // pred_region
        %s177 = ssub.s32 %s15, 1
        %s178 = sand.u32 %s42, 1
        %s179 = scalar_lea.sflag [#allocation4], %s178
        %s180 = sand.u32 %s42, 1
        %s181 = smul.addr %s180, 38
        %s182 = scalar_lea.vmem [#allocation3], %s181
        // Predicated region
        $region33: #{tpu_custom_call.1} parent=31 // pred_check
          %p183 = pneg %p55
        $region34: #{tpu_custom_call.1} parent=31 // pred_check_branch
          %185 = sbr.rel (%p183) target = $region36
        $region35: #{tpu_custom_call.1} parent=31 // pred_region
          %186 = dma.done %s179, 608
        $region36: #{tpu_custom_call.1} parent=31 // pred_fallthru
          _
        %s187 = sand.u32 %s42, 1
        %s188 = scalar_lea.sflag [#allocation4], %s187
        %s189 = sand.u32 %s42, 1
        %s190 = smul.addr %s189, 38
        %s191 = scalar_lea.vmem [#allocation3], %s190
        %p192 = pneg %p55
        %p193 = pneg %p52
        %p194 = pneg %p76
        %p195 = pneg %p73
        %p196 = pneg %p97
        %p197 = pneg %p94
        %p198 = pneg %p125
        %p199 = pneg %p122
        %s200 = sand.u32 %s112, 1
        %s201 = scalar_lea.sflag [#allocation5], %s200
        %s202 = sand.u32 %s112, 1
        %s203 = smul.addr %s202, 128
        %s204 = scalar_lea.vmem [#allocation6], %s203
        %v206 = vld [vmem:[%s182] sm:$0xff]
        %v207 = vld [vmem:[%s182 + $0x8] sm:$0xff]
        %v208 = vld [vmem:[%s182 + $0x10] sm:$0xff]
        %v209 = vld [vmem:[%s182 + $0x18] sm:$0xff]
        %v214 = vcombine.high %v206, %v206
        %v216 = vunpack.c.l.s4 1983009808
        %v217 = vunpack.c.0.s8 %v216
        %v218 = vlaneseq
        %v219 = vshrl.u32 %v218, 7
        %v220 = vsub.s32 %v217, %v219
        %v221 = vrot.slane %v206, %v220
        %v223 = vunpack.c.l.s4 1983009808
        %v224 = vunpack.c.0.s8 %v223
        %v225 = vlaneseq
        %v226 = vshrl.u32 %v225, 7
        %v227 = vsub.s32 %v224, %v226
        %v228 = vrot.slane %v214, %v227
        %v229 = vcombine.high %v207, %v207
        %v231 = vunpack.c.l.s4 1983009808
        %v232 = vunpack.c.0.s8 %v231
        %v233 = vlaneseq
        %v234 = vshrl.u32 %v233, 7
        %v235 = vsub.s32 %v232, %v234
        %v236 = vrot.slane %v207, %v235
        %v238 = vunpack.c.l.s4 1983009808
        %v239 = vunpack.c.0.s8 %v238
        %v240 = vlaneseq
        %v241 = vshrl.u32 %v240, 7
        %v242 = vsub.s32 %v239, %v241
        %v243 = vrot.slane %v229, %v242
        %v244 = vcombine.high %v208, %v208
        %v246 = vunpack.c.l.s4 1983009808
        %v247 = vunpack.c.0.s8 %v246
        %v248 = vlaneseq
        %v249 = vshrl.u32 %v248, 7
        %v250 = vsub.s32 %v247, %v249
        %v251 = vrot.slane %v208, %v250
        %v253 = vunpack.c.l.s4 1983009808
        %v254 = vunpack.c.0.s8 %v253
        %v255 = vlaneseq
        %v256 = vshrl.u32 %v255, 7
        %v257 = vsub.s32 %v254, %v256
        %v258 = vrot.slane %v244, %v257
        %v259 = vcombine.high %v209, %v209
        %v261 = vunpack.c.l.s4 1983009808
        %v262 = vunpack.c.0.s8 %v261
        %v263 = vlaneseq
        %v264 = vshrl.u32 %v263, 7
        %v265 = vsub.s32 %v262, %v264
        %v266 = vrot.slane %v209, %v265
        %v268 = vunpack.c.l.s4 1983009808
        %v269 = vunpack.c.0.s8 %v268
        %v270 = vlaneseq
        %v271 = vshrl.u32 %v270, 7
        %v272 = vsub.s32 %v269, %v271
        %v273 = vrot.slane %v259, %v272
        %282 = vst [vmem:[#allocation2] sm:$0x33] %v221
        %283 = vst [vmem:[#allocation2 + $0x8] sm:$0x33] %v228
        %284 = vst [vmem:[#allocation2 + $0x10] sm:$0x33] %v236
        %285 = vst [vmem:[#allocation2 + $0x18] sm:$0x33] %v243
        %286 = vst [vmem:[#allocation2 + $0x20] sm:$0x33] %v251
        %287 = vst [vmem:[#allocation2 + $0x28] sm:$0x33] %v258
        %288 = vst [vmem:[#allocation2 + $0x30] sm:$0x33] %v266
        %289 = vst [vmem:[#allocation2 + $0x38] sm:$0x33] %v273
        %v290 = vld [vmem:[%s182] sm:$0xff]
        %v291 = vld [vmem:[%s182 + $0x8] sm:$0xff]
        %v292 = vld [vmem:[%s182 + $0x10] sm:$0xff]
        %v293 = vld [vmem:[%s182 + $0x18] sm:$0xff]
        %v294 = vld [vmem:[%s182 + $0x20] sm:$0x3]
        %v300 = vcombine.low %v290, %v290
        %v302 = vunpack.c.l.s4 1983009808
        %v303 = vunpack.c.0.s8 %v302
        %v304 = vlaneseq
        %v305 = vshrl.u32 %v304, 7
        %v306 = vsub.s32 %v303, %v305
        %v307 = vrot.slane %v300, %v306
        %v309 = vunpack.c.l.s4 1983009808
        %v310 = vunpack.c.0.s8 %v309
        %v311 = vlaneseq
        %v312 = vshrl.u32 %v311, 7
        %v313 = vsub.s32 %v310, %v312
        %v314 = vrot.slane %v290, %v313
        %v315 = vcombine.low %v291, %v291
        %v317 = vunpack.c.l.s4 1983009808
        %v318 = vunpack.c.0.s8 %v317
        %v319 = vlaneseq
        %v320 = vshrl.u32 %v319, 7
        %v321 = vsub.s32 %v318, %v320
        %v322 = vrot.slane %v315, %v321
        %v324 = vunpack.c.l.s4 1983009808
        %v325 = vunpack.c.0.s8 %v324
        %v326 = vlaneseq
        %v327 = vshrl.u32 %v326, 7
        %v328 = vsub.s32 %v325, %v327
        %v329 = vrot.slane %v291, %v328
        %v330 = vcombine.low %v292, %v292
        %v332 = vunpack.c.l.s4 1983009808
        %v333 = vunpack.c.0.s8 %v332
        %v334 = vlaneseq
        %v335 = vshrl.u32 %v334, 7
        %v336 = vsub.s32 %v333, %v335
        %v337 = vrot.slane %v330, %v336
        %v339 = vunpack.c.l.s4 1983009808
        %v340 = vunpack.c.0.s8 %v339
        %v341 = vlaneseq
        %v342 = vshrl.u32 %v341, 7
        %v343 = vsub.s32 %v340, %v342
        %v344 = vrot.slane %v292, %v343
        %v345 = vcombine.low %v293, %v293
        %v347 = vunpack.c.l.s4 1983009808
        %v348 = vunpack.c.0.s8 %v347
        %v349 = vlaneseq
        %v350 = vshrl.u32 %v349, 7
        %v351 = vsub.s32 %v348, %v350
        %v352 = vrot.slane %v345, %v351
        %v354 = vunpack.c.l.s4 1983009808
        %v355 = vunpack.c.0.s8 %v354
        %v356 = vlaneseq
        %v357 = vshrl.u32 %v356, 7
        %v358 = vsub.s32 %v355, %v357
        %v359 = vrot.slane %v293, %v358
        %v360 = vcombine.low %v294, %v294
        %v362 = vunpack.c.l.s4 1983009808
        %v363 = vunpack.c.0.s8 %v362
        %v364 = vlaneseq
        %v365 = vshrl.u32 %v364, 7
        %v366 = vsub.s32 %v363, %v365
        %v367 = vrot.slane %v360, %v366
        %368 = vrot.lane.b32.xlu0 %v307, 127
        %v369 = vpop.permute.xlu0 %368
        %370 = vrot.lane.b32.xlu0 %v314, 127
        %v371 = vpop.permute.xlu0 %370
        %372 = vrot.lane.b32.xlu0 %v322, 127
        %v373 = vpop.permute.xlu0 %372
        %374 = vrot.lane.b32.xlu0 %v329, 127
        %v375 = vpop.permute.xlu0 %374
        %376 = vrot.lane.b32.xlu0 %v337, 127
        %v377 = vpop.permute.xlu0 %376
        %378 = vrot.lane.b32.xlu0 %v344, 127
        %v379 = vpop.permute.xlu0 %378
        %380 = vrot.lane.b32.xlu0 %v352, 127
        %v381 = vpop.permute.xlu0 %380
        %382 = vrot.lane.b32.xlu0 %v359, 127
        %v383 = vpop.permute.xlu0 %382
        %384 = vrot.lane.b32.xlu0 %v367, 127
        %v385 = vpop.permute.xlu0 %384
        %v386 = vrot.slane %v369, 4
        %v387 = vrot.slane %v371, 4
        %v388 = vrot.slane %v373, 4
        %v389 = vrot.slane %v375, 4
        %v390 = vrot.slane %v377, 4
        %v391 = vrot.slane %v379, 4
        %v392 = vrot.slane %v381, 4
        %v393 = vrot.slane %v383, 4
        %v394 = vrot.slane %v385, 4
        %vm395 = vcmask 1043456
        %v396 = vsel %vm395, %v386, %v387
        %vm397 = vcmask 1039360
        %v398 = vsel %vm397, %v369, %v396
        %v399 = vsel %vm395, %v387, %v388
        %v400 = vsel %vm397, %v371, %v399
        %v401 = vsel %vm395, %v388, %v389
        %v402 = vsel %vm397, %v373, %v401
        %v403 = vsel %vm395, %v389, %v390
        %v404 = vsel %vm397, %v375, %v403
        %v405 = vsel %vm395, %v390, %v391
        %v406 = vsel %vm397, %v377, %v405
        %v407 = vsel %vm395, %v391, %v392
        %v408 = vsel %vm397, %v379, %v407
        %v409 = vsel %vm395, %v392, %v393
        %v410 = vsel %vm397, %v381, %v409
        %v411 = vsel %vm395, %v393, %v394
        %v412 = vsel %vm397, %v383, %v411
        %421 = vst [vmem:[#allocation2] sm:$0xcc] %v398
        %422 = vst [vmem:[#allocation2 + $0x8] sm:$0xcc] %v400
        %423 = vst [vmem:[#allocation2 + $0x10] sm:$0xcc] %v402
        %424 = vst [vmem:[#allocation2 + $0x18] sm:$0xcc] %v404
        %425 = vst [vmem:[#allocation2 + $0x20] sm:$0xcc] %v406
        %426 = vst [vmem:[#allocation2 + $0x28] sm:$0xcc] %v408
        %427 = vst [vmem:[#allocation2 + $0x30] sm:$0xcc] %v410
        %428 = vst [vmem:[#allocation2 + $0x38] sm:$0xcc] %v412
        %v429 = vld [vmem:[%s182] sm:$0xff]
        %v430 = vld [vmem:[%s182 + $0x8] sm:$0xff]
        %v431 = vld [vmem:[%s182 + $0x10] sm:$0xff]
        %v432 = vld [vmem:[%s182 + $0x18] sm:$0xff]
        %v433 = vld [vmem:[%s182 + $0x20] sm:$0x3]
        %v439 = vcombine.high %v429, %v429
        %v441 = vunpack.c.l.s4 1983009808
        %v442 = vunpack.c.0.s8 %v441
        %v443 = vlaneseq
        %v444 = vshrl.u32 %v443, 7
        %v445 = vsub.s32 %v442, %v444
        %v446 = vrot.slane %v429, %v445
        %v448 = vunpack.c.l.s4 1983009808
        %v449 = vunpack.c.0.s8 %v448
        %v450 = vlaneseq
        %v451 = vshrl.u32 %v450, 7
        %v452 = vsub.s32 %v449, %v451
        %v453 = vrot.slane %v439, %v452
        %v454 = vcombine.high %v430, %v430
        %v456 = vunpack.c.l.s4 1983009808
        %v457 = vunpack.c.0.s8 %v456
        %v458 = vlaneseq
        %v459 = vshrl.u32 %v458, 7
        %v460 = vsub.s32 %v457, %v459
        %v461 = vrot.slane %v430, %v460
        %v463 = vunpack.c.l.s4 1983009808
        %v464 = vunpack.c.0.s8 %v463
        %v465 = vlaneseq
        %v466 = vshrl.u32 %v465, 7
        %v467 = vsub.s32 %v464, %v466
        %v468 = vrot.slane %v454, %v467
        %v469 = vcombine.high %v431, %v431
        %v471 = vunpack.c.l.s4 1983009808
        %v472 = vunpack.c.0.s8 %v471
        %v473 = vlaneseq
        %v474 = vshrl.u32 %v473, 7
        %v475 = vsub.s32 %v472, %v474
        %v476 = vrot.slane %v431, %v475
        %v478 = vunpack.c.l.s4 1983009808
        %v479 = vunpack.c.0.s8 %v478
        %v480 = vlaneseq
        %v481 = vshrl.u32 %v480, 7
        %v482 = vsub.s32 %v479, %v481
        %v483 = vrot.slane %v469, %v482
        %v484 = vcombine.high %v432, %v432
        %v486 = vunpack.c.l.s4 1983009808
        %v487 = vunpack.c.0.s8 %v486
        %v488 = vlaneseq
        %v489 = vshrl.u32 %v488, 7
        %v490 = vsub.s32 %v487, %v489
        %v491 = vrot.slane %v432, %v490
        %v493 = vunpack.c.l.s4 1983009808
        %v494 = vunpack.c.0.s8 %v493
        %v495 = vlaneseq
        %v496 = vshrl.u32 %v495, 7
        %v497 = vsub.s32 %v494, %v496
        %v498 = vrot.slane %v484, %v497
        %v500 = vunpack.c.l.s4 1983009808
        %v501 = vunpack.c.0.s8 %v500
        %v502 = vlaneseq
        %v503 = vshrl.u32 %v502, 7
        %v504 = vsub.s32 %v501, %v503
        %v505 = vrot.slane %v433, %v504
        %506 = vrot.lane.b32.xlu0 %v446, 126
        %v507 = vpop.permute.xlu0 %506
        %508 = vrot.lane.b32.xlu0 %v453, 126
        %v509 = vpop.permute.xlu0 %508
        %510 = vrot.lane.b32.xlu0 %v461, 126
        %v511 = vpop.permute.xlu0 %510
        %512 = vrot.lane.b32.xlu0 %v468, 126
        %v513 = vpop.permute.xlu0 %512
        %514 = vrot.lane.b32.xlu0 %v476, 126
        %v515 = vpop.permute.xlu0 %514
        %516 = vrot.lane.b32.xlu0 %v483, 126
        %v517 = vpop.permute.xlu0 %516
        %518 = vrot.lane.b32.xlu0 %v491, 126
        %v519 = vpop.permute.xlu0 %518
        %520 = vrot.lane.b32.xlu0 %v498, 126
        %v521 = vpop.permute.xlu0 %520
        %522 = vrot.lane.b32.xlu0 %v505, 126
        %v523 = vpop.permute.xlu0 %522
        %v524 = vrot.slane %v507, 4
        %v525 = vrot.slane %v509, 4
        %v526 = vrot.slane %v511, 4
        %v527 = vrot.slane %v513, 4
        %v528 = vrot.slane %v515, 4
        %v529 = vrot.slane %v517, 4
        %v530 = vrot.slane %v519, 4
        %v531 = vrot.slane %v521, 4
        %v532 = vrot.slane %v523, 4
        %v533 = vsel %vm395, %v524, %v525
        %vm534 = vcmask 1031168
        %v535 = vsel %vm534, %v507, %v533
        %v536 = vsel %vm395, %v525, %v526
        %v537 = vsel %vm534, %v509, %v536
        %v538 = vsel %vm395, %v526, %v527
        %v539 = vsel %vm534, %v511, %v538
        %v540 = vsel %vm395, %v527, %v528
        %v541 = vsel %vm534, %v513, %v540
        %v542 = vsel %vm395, %v528, %v529
        %v543 = vsel %vm534, %v515, %v542
        %v544 = vsel %vm395, %v529, %v530
        %v545 = vsel %vm534, %v517, %v544
        %v546 = vsel %vm395, %v530, %v531
        %v547 = vsel %vm534, %v519, %v546
        %v548 = vsel %vm395, %v531, %v532
        %v549 = vsel %vm534, %v521, %v548
        %558 = vst [vmem:[#allocation2 + $0x40] sm:$0x33] %v535
        %559 = vst [vmem:[#allocation2 + $0x48] sm:$0x33] %v537
        %560 = vst [vmem:[#allocation2 + $0x50] sm:$0x33] %v539
        %561 = vst [vmem:[#allocation2 + $0x58] sm:$0x33] %v541
        %562 = vst [vmem:[#allocation2 + $0x60] sm:$0x33] %v543
        %563 = vst [vmem:[#allocation2 + $0x68] sm:$0x33] %v545
        %564 = vst [vmem:[#allocation2 + $0x70] sm:$0x33] %v547
        %565 = vst [vmem:[#allocation2 + $0x78] sm:$0x33] %v549
        %v566 = vld [vmem:[%s182 + $0x2] sm:$0xff]
        %v567 = vld [vmem:[%s182 + $0xa] sm:$0xff]
        %v568 = vld [vmem:[%s182 + $0x12] sm:$0xff]
        %v569 = vld [vmem:[%s182 + $0x1a] sm:$0xff]
        %v574 = vcombine.low %v566, %v566
        %v576 = vunpack.c.l.s4 1983009808
        %v577 = vunpack.c.0.s8 %v576
        %v578 = vlaneseq
        %v579 = vshrl.u32 %v578, 7
        %v580 = vsub.s32 %v577, %v579
        %v581 = vrot.slane %v574, %v580
        %v583 = vunpack.c.l.s4 1983009808
        %v584 = vunpack.c.0.s8 %v583
        %v585 = vlaneseq
        %v586 = vshrl.u32 %v585, 7
        %v587 = vsub.s32 %v584, %v586
        %v588 = vrot.slane %v566, %v587
        %v589 = vcombine.low %v567, %v567
        %v591 = vunpack.c.l.s4 1983009808
        %v592 = vunpack.c.0.s8 %v591
        %v593 = vlaneseq
        %v594 = vshrl.u32 %v593, 7
        %v595 = vsub.s32 %v592, %v594
        %v596 = vrot.slane %v589, %v595
        %v598 = vunpack.c.l.s4 1983009808
        %v599 = vunpack.c.0.s8 %v598
        %v600 = vlaneseq
        %v601 = vshrl.u32 %v600, 7
        %v602 = vsub.s32 %v599, %v601
        %v603 = vrot.slane %v567, %v602
        %v604 = vcombine.low %v568, %v568
        %v606 = vunpack.c.l.s4 1983009808
        %v607 = vunpack.c.0.s8 %v606
        %v608 = vlaneseq
        %v609 = vshrl.u32 %v608, 7
        %v610 = vsub.s32 %v607, %v609
        %v611 = vrot.slane %v604, %v610
        %v613 = vunpack.c.l.s4 1983009808
        %v614 = vunpack.c.0.s8 %v613
        %v615 = vlaneseq
        %v616 = vshrl.u32 %v615, 7
        %v617 = vsub.s32 %v614, %v616
        %v618 = vrot.slane %v568, %v617
        %v619 = vcombine.low %v569, %v569
        %v621 = vunpack.c.l.s4 1983009808
        %v622 = vunpack.c.0.s8 %v621
        %v623 = vlaneseq
        %v624 = vshrl.u32 %v623, 7
        %v625 = vsub.s32 %v622, %v624
        %v626 = vrot.slane %v619, %v625
        %v628 = vunpack.c.l.s4 1983009808
        %v629 = vunpack.c.0.s8 %v628
        %v630 = vlaneseq
        %v631 = vshrl.u32 %v630, 7
        %v632 = vsub.s32 %v629, %v631
        %v633 = vrot.slane %v569, %v632
        %642 = vst [vmem:[#allocation2 + $0x40] sm:$0xcc] %v581
        %643 = vst [vmem:[#allocation2 + $0x48] sm:$0xcc] %v588
        %644 = vst [vmem:[#allocation2 + $0x50] sm:$0xcc] %v596
        %645 = vst [vmem:[#allocation2 + $0x58] sm:$0xcc] %v603
        %646 = vst [vmem:[#allocation2 + $0x60] sm:$0xcc] %v611
        %647 = vst [vmem:[#allocation2 + $0x68] sm:$0xcc] %v618
        %648 = vst [vmem:[#allocation2 + $0x70] sm:$0xcc] %v626
        %649 = vst [vmem:[#allocation2 + $0x78] sm:$0xcc] %v633
        %v650 = vld [vmem:[%s182 + $0x2] sm:$0xff]
        %v651 = vld [vmem:[%s182 + $0xa] sm:$0xff]
        %v652 = vld [vmem:[%s182 + $0x12] sm:$0xff]
        %v653 = vld [vmem:[%s182 + $0x1a] sm:$0xff]
        %v654 = vld [vmem:[%s182 + $0x22] sm:$0x3]
        %v660 = vcombine.high %v650, %v650
        %v662 = vunpack.c.l.s4 1983009808
        %v663 = vunpack.c.0.s8 %v662
        %v664 = vlaneseq
        %v665 = vshrl.u32 %v664, 7
        %v666 = vsub.s32 %v663, %v665
        %v667 = vrot.slane %v650, %v666
        %v669 = vunpack.c.l.s4 1983009808
        %v670 = vunpack.c.0.s8 %v669
        %v671 = vlaneseq
        %v672 = vshrl.u32 %v671, 7
        %v673 = vsub.s32 %v670, %v672
        %v674 = vrot.slane %v660, %v673
        %v675 = vcombine.high %v651, %v651
        %v677 = vunpack.c.l.s4 1983009808
        %v678 = vunpack.c.0.s8 %v677
        %v679 = vlaneseq
        %v680 = vshrl.u32 %v679, 7
        %v681 = vsub.s32 %v678, %v680
        %v682 = vrot.slane %v651, %v681
        %v684 = vunpack.c.l.s4 1983009808
        %v685 = vunpack.c.0.s8 %v684
        %v686 = vlaneseq
        %v687 = vshrl.u32 %v686, 7
        %v688 = vsub.s32 %v685, %v687
        %v689 = vrot.slane %v675, %v688
        %v690 = vcombine.high %v652, %v652
        %v692 = vunpack.c.l.s4 1983009808
        %v693 = vunpack.c.0.s8 %v692
        %v694 = vlaneseq
        %v695 = vshrl.u32 %v694, 7
        %v696 = vsub.s32 %v693, %v695
        %v697 = vrot.slane %v652, %v696
        %v699 = vunpack.c.l.s4 1983009808
        %v700 = vunpack.c.0.s8 %v699
        %v701 = vlaneseq
        %v702 = vshrl.u32 %v701, 7
        %v703 = vsub.s32 %v700, %v702
        %v704 = vrot.slane %v690, %v703
        %v705 = vcombine.high %v653, %v653
        %v707 = vunpack.c.l.s4 1983009808
        %v708 = vunpack.c.0.s8 %v707
        %v709 = vlaneseq
        %v710 = vshrl.u32 %v709, 7
        %v711 = vsub.s32 %v708, %v710
        %v712 = vrot.slane %v653, %v711
        %v714 = vunpack.c.l.s4 1983009808
        %v715 = vunpack.c.0.s8 %v714
        %v716 = vlaneseq
        %v717 = vshrl.u32 %v716, 7
        %v718 = vsub.s32 %v715, %v717
        %v719 = vrot.slane %v705, %v718
        %v721 = vunpack.c.l.s4 1983009808
        %v722 = vunpack.c.0.s8 %v721
        %v723 = vlaneseq
        %v724 = vshrl.u32 %v723, 7
        %v725 = vsub.s32 %v722, %v724
        %v726 = vrot.slane %v654, %v725
        %727 = vrot.lane.b32.xlu0 %v667, 127
        %v728 = vpop.permute.xlu0 %727
        %729 = vrot.lane.b32.xlu0 %v674, 127
        %v730 = vpop.permute.xlu0 %729
        %731 = vrot.lane.b32.xlu0 %v682, 127
        %v732 = vpop.permute.xlu0 %731
        %733 = vrot.lane.b32.xlu0 %v689, 127
        %v734 = vpop.permute.xlu0 %733
        %735 = vrot.lane.b32.xlu0 %v697, 127
        %v736 = vpop.permute.xlu0 %735
        %737 = vrot.lane.b32.xlu0 %v704, 127
        %v738 = vpop.permute.xlu0 %737
        %739 = vrot.lane.b32.xlu0 %v712, 127
        %v740 = vpop.permute.xlu0 %739
        %741 = vrot.lane.b32.xlu0 %v719, 127
        %v742 = vpop.permute.xlu0 %741
        %743 = vrot.lane.b32.xlu0 %v726, 127
        %v744 = vpop.permute.xlu0 %743
        %v745 = vrot.slane %v728, 4
        %v746 = vrot.slane %v730, 4
        %v747 = vrot.slane %v732, 4
        %v748 = vrot.slane %v734, 4
        %v749 = vrot.slane %v736, 4
        %v750 = vrot.slane %v738, 4
        %v751 = vrot.slane %v740, 4
        %v752 = vrot.slane %v742, 4
        %v753 = vrot.slane %v744, 4
        %v754 = vsel %vm395, %v745, %v746
        %v755 = vsel %vm397, %v728, %v754
        %v756 = vsel %vm395, %v746, %v747
        %v757 = vsel %vm397, %v730, %v756
        %v758 = vsel %vm395, %v747, %v748
        %v759 = vsel %vm397, %v732, %v758
        %v760 = vsel %vm395, %v748, %v749
        %v761 = vsel %vm397, %v734, %v760
        %v762 = vsel %vm395, %v749, %v750
        %v763 = vsel %vm397, %v736, %v762
        %v764 = vsel %vm395, %v750, %v751
        %v765 = vsel %vm397, %v738, %v764
        %v766 = vsel %vm395, %v751, %v752
        %v767 = vsel %vm397, %v740, %v766
        %v768 = vsel %vm395, %v752, %v753
        %v769 = vsel %vm397, %v742, %v768
        %778 = vst [vmem:[#allocation2 + $0x80] sm:$0x33] %v755
        %779 = vst [vmem:[#allocation2 + $0x88] sm:$0x33] %v757
        %780 = vst [vmem:[#allocation2 + $0x90] sm:$0x33] %v759
        %781 = vst [vmem:[#allocation2 + $0x98] sm:$0x33] %v761
        %782 = vst [vmem:[#allocation2 + $0xa0] sm:$0x33] %v763
        %783 = vst [vmem:[#allocation2 + $0xa8] sm:$0x33] %v765
        %784 = vst [vmem:[#allocation2 + $0xb0] sm:$0x33] %v767
        %785 = vst [vmem:[#allocation2 + $0xb8] sm:$0x33] %v769
        %v786 = vld [vmem:[%s182 + $0x2] sm:$0xff]
        %v787 = vld [vmem:[%s182 + $0xa] sm:$0xff]
        %v788 = vld [vmem:[%s182 + $0x12] sm:$0xff]
        %v789 = vld [vmem:[%s182 + $0x1a] sm:$0xff]
        %v790 = vld [vmem:[%s182 + $0x22] sm:$0x3]
        %v796 = vcombine.low %v786, %v786
        %v798 = vunpack.c.l.s4 1983009808
        %v799 = vunpack.c.0.s8 %v798
        %v800 = vlaneseq
        %v801 = vshrl.u32 %v800, 7
        %v802 = vsub.s32 %v799, %v801
        %v803 = vrot.slane %v796, %v802
        %v805 = vunpack.c.l.s4 1983009808
        %v806 = vunpack.c.0.s8 %v805
        %v807 = vlaneseq
        %v808 = vshrl.u32 %v807, 7
        %v809 = vsub.s32 %v806, %v808
        %v810 = vrot.slane %v786, %v809
        %v811 = vcombine.low %v787, %v787
        %v813 = vunpack.c.l.s4 1983009808
        %v814 = vunpack.c.0.s8 %v813
        %v815 = vlaneseq
        %v816 = vshrl.u32 %v815, 7
        %v817 = vsub.s32 %v814, %v816
        %v818 = vrot.slane %v811, %v817
        %v820 = vunpack.c.l.s4 1983009808
        %v821 = vunpack.c.0.s8 %v820
        %v822 = vlaneseq
        %v823 = vshrl.u32 %v822, 7
        %v824 = vsub.s32 %v821, %v823
        %v825 = vrot.slane %v787, %v824
        %v826 = vcombine.low %v788, %v788
        %v828 = vunpack.c.l.s4 1983009808
        %v829 = vunpack.c.0.s8 %v828
        %v830 = vlaneseq
        %v831 = vshrl.u32 %v830, 7
        %v832 = vsub.s32 %v829, %v831
        %v833 = vrot.slane %v826, %v832
        %v835 = vunpack.c.l.s4 1983009808
        %v836 = vunpack.c.0.s8 %v835
        %v837 = vlaneseq
        %v838 = vshrl.u32 %v837, 7
        %v839 = vsub.s32 %v836, %v838
        %v840 = vrot.slane %v788, %v839
        %v841 = vcombine.low %v789, %v789
        %v843 = vunpack.c.l.s4 1983009808
        %v844 = vunpack.c.0.s8 %v843
        %v845 = vlaneseq
        %v846 = vshrl.u32 %v845, 7
        %v847 = vsub.s32 %v844, %v846
        %v848 = vrot.slane %v841, %v847
        %v850 = vunpack.c.l.s4 1983009808
        %v851 = vunpack.c.0.s8 %v850
        %v852 = vlaneseq
        %v853 = vshrl.u32 %v852, 7
        %v854 = vsub.s32 %v851, %v853
        %v855 = vrot.slane %v789, %v854
        %v856 = vcombine.low %v790, %v790
        %v858 = vunpack.c.l.s4 1983009808
        %v859 = vunpack.c.0.s8 %v858
        %v860 = vlaneseq
        %v861 = vshrl.u32 %v860, 7
        %v862 = vsub.s32 %v859, %v861
        %v863 = vrot.slane %v856, %v862
        %864 = vrot.lane.b32.xlu0 %v803, 126
        %v865 = vpop.permute.xlu0 %864
        %866 = vrot.lane.b32.xlu0 %v810, 126
        %v867 = vpop.permute.xlu0 %866
        %868 = vrot.lane.b32.xlu0 %v818, 126
        %v869 = vpop.permute.xlu0 %868
        %870 = vrot.lane.b32.xlu0 %v825, 126
        %v871 = vpop.permute.xlu0 %870
        %872 = vrot.lane.b32.xlu0 %v833, 126
        %v873 = vpop.permute.xlu0 %872
        %874 = vrot.lane.b32.xlu0 %v840, 126
        %v875 = vpop.permute.xlu0 %874
        %876 = vrot.lane.b32.xlu0 %v848, 126
        %v877 = vpop.permute.xlu0 %876
        %878 = vrot.lane.b32.xlu0 %v855, 126
        %v879 = vpop.permute.xlu0 %878
        %880 = vrot.lane.b32.xlu0 %v863, 126
        %v881 = vpop.permute.xlu0 %880
        %v882 = vrot.slane %v865, 4
        %v883 = vrot.slane %v867, 4
        %v884 = vrot.slane %v869, 4
        %v885 = vrot.slane %v871, 4
        %v886 = vrot.slane %v873, 4
        %v887 = vrot.slane %v875, 4
        %v888 = vrot.slane %v877, 4
        %v889 = vrot.slane %v879, 4
        %v890 = vrot.slane %v881, 4
        %v891 = vsel %vm395, %v882, %v883
        %v892 = vsel %vm534, %v865, %v891
        %v893 = vsel %vm395, %v883, %v884
        %v894 = vsel %vm534, %v867, %v893
        %v895 = vsel %vm395, %v884, %v885
        %v896 = vsel %vm534, %v869, %v895
        %v897 = vsel %vm395, %v885, %v886
        %v898 = vsel %vm534, %v871, %v897
        %v899 = vsel %vm395, %v886, %v887
        %v900 = vsel %vm534, %v873, %v899
        %v901 = vsel %vm395, %v887, %v888
        %v902 = vsel %vm534, %v875, %v901
        %v903 = vsel %vm395, %v888, %v889
        %v904 = vsel %vm534, %v877, %v903
        %v905 = vsel %vm395, %v889, %v890
        %v906 = vsel %vm534, %v879, %v905
        %915 = vst [vmem:[#allocation2 + $0x80] sm:$0xcc] %v892
        %916 = vst [vmem:[#allocation2 + $0x88] sm:$0xcc] %v894
        %917 = vst [vmem:[#allocation2 + $0x90] sm:$0xcc] %v896
        %918 = vst [vmem:[#allocation2 + $0x98] sm:$0xcc] %v898
        %919 = vst [vmem:[#allocation2 + $0xa0] sm:$0xcc] %v900
        %920 = vst [vmem:[#allocation2 + $0xa8] sm:$0xcc] %v902
        %921 = vst [vmem:[#allocation2 + $0xb0] sm:$0xcc] %v904
        %922 = vst [vmem:[#allocation2 + $0xb8] sm:$0xcc] %v906
        %v923 = vld [vmem:[%s182 + $0x4] sm:$0xff]
        %v924 = vld [vmem:[%s182 + $0xc] sm:$0xff]
        %v925 = vld [vmem:[%s182 + $0x14] sm:$0xff]
        %v926 = vld [vmem:[%s182 + $0x1c] sm:$0xff]
        %v931 = vcombine.high %v923, %v923
        %v933 = vunpack.c.l.s4 1983009808
        %v934 = vunpack.c.0.s8 %v933
        %v935 = vlaneseq
        %v936 = vshrl.u32 %v935, 7
        %v937 = vsub.s32 %v934, %v936
        %v938 = vrot.slane %v923, %v937
        %v940 = vunpack.c.l.s4 1983009808
        %v941 = vunpack.c.0.s8 %v940
        %v942 = vlaneseq
        %v943 = vshrl.u32 %v942, 7
        %v944 = vsub.s32 %v941, %v943
        %v945 = vrot.slane %v931, %v944
        %v946 = vcombine.high %v924, %v924
        %v948 = vunpack.c.l.s4 1983009808
        %v949 = vunpack.c.0.s8 %v948
        %v950 = vlaneseq
        %v951 = vshrl.u32 %v950, 7
        %v952 = vsub.s32 %v949, %v951
        %v953 = vrot.slane %v924, %v952
        %v955 = vunpack.c.l.s4 1983009808
        %v956 = vunpack.c.0.s8 %v955
        %v957 = vlaneseq
        %v958 = vshrl.u32 %v957, 7
        %v959 = vsub.s32 %v956, %v958
        %v960 = vrot.slane %v946, %v959
        %v961 = vcombine.high %v925, %v925
        %v963 = vunpack.c.l.s4 1983009808
        %v964 = vunpack.c.0.s8 %v963
        %v965 = vlaneseq
        %v966 = vshrl.u32 %v965, 7
        %v967 = vsub.s32 %v964, %v966
        %v968 = vrot.slane %v925, %v967
        %v970 = vunpack.c.l.s4 1983009808
        %v971 = vunpack.c.0.s8 %v970
        %v972 = vlaneseq
        %v973 = vshrl.u32 %v972, 7
        %v974 = vsub.s32 %v971, %v973
        %v975 = vrot.slane %v961, %v974
        %v976 = vcombine.high %v926, %v926
        %v978 = vunpack.c.l.s4 1983009808
        %v979 = vunpack.c.0.s8 %v978
        %v980 = vlaneseq
        %v981 = vshrl.u32 %v980, 7
        %v982 = vsub.s32 %v979, %v981
        %v983 = vrot.slane %v926, %v982
        %v985 = vunpack.c.l.s4 1983009808
        %v986 = vunpack.c.0.s8 %v985
        %v987 = vlaneseq
        %v988 = vshrl.u32 %v987, 7
        %v989 = vsub.s32 %v986, %v988
        %v990 = vrot.slane %v976, %v989
        %999 = vst [vmem:[#allocation2 + $0xc0] sm:$0x33] %v938
        %1000 = vst [vmem:[#allocation2 + $0xc8] sm:$0x33] %v945
        %1001 = vst [vmem:[#allocation2 + $0xd0] sm:$0x33] %v953
        %1002 = vst [vmem:[#allocation2 + $0xd8] sm:$0x33] %v960
        %1003 = vst [vmem:[#allocation2 + $0xe0] sm:$0x33] %v968
        %1004 = vst [vmem:[#allocation2 + $0xe8] sm:$0x33] %v975
        %1005 = vst [vmem:[#allocation2 + $0xf0] sm:$0x33] %v983
        %1006 = vst [vmem:[#allocation2 + $0xf8] sm:$0x33] %v990
        %v1007 = vld [vmem:[%s182 + $0x4] sm:$0xff]
        %v1008 = vld [vmem:[%s182 + $0xc] sm:$0xff]
        %v1009 = vld [vmem:[%s182 + $0x14] sm:$0xff]
        %v1010 = vld [vmem:[%s182 + $0x1c] sm:$0xff]
        %v1011 = vld [vmem:[%s182 + $0x24] sm:$0x3]
        %v1017 = vcombine.low %v1007, %v1007
        %v1019 = vunpack.c.l.s4 1983009808
        %v1020 = vunpack.c.0.s8 %v1019
        %v1021 = vlaneseq
        %v1022 = vshrl.u32 %v1021, 7
        %v1023 = vsub.s32 %v1020, %v1022
        %v1024 = vrot.slane %v1017, %v1023
        %v1026 = vunpack.c.l.s4 1983009808
        %v1027 = vunpack.c.0.s8 %v1026
        %v1028 = vlaneseq
        %v1029 = vshrl.u32 %v1028, 7
        %v1030 = vsub.s32 %v1027, %v1029
        %v1031 = vrot.slane %v1007, %v1030
        %v1032 = vcombine.low %v1008, %v1008
        %v1034 = vunpack.c.l.s4 1983009808
        %v1035 = vunpack.c.0.s8 %v1034
        %v1036 = vlaneseq
        %v1037 = vshrl.u32 %v1036, 7
        %v1038 = vsub.s32 %v1035, %v1037
        %v1039 = vrot.slane %v1032, %v1038
        %v1041 = vunpack.c.l.s4 1983009808
        %v1042 = vunpack.c.0.s8 %v1041
        %v1043 = vlaneseq
        %v1044 = vshrl.u32 %v1043, 7
        %v1045 = vsub.s32 %v1042, %v1044
        %v1046 = vrot.slane %v1008, %v1045
        %v1047 = vcombine.low %v1009, %v1009
        %v1049 = vunpack.c.l.s4 1983009808
        %v1050 = vunpack.c.0.s8 %v1049
        %v1051 = vlaneseq
        %v1052 = vshrl.u32 %v1051, 7
        %v1053 = vsub.s32 %v1050, %v1052
        %v1054 = vrot.slane %v1047, %v1053
        %v1056 = vunpack.c.l.s4 1983009808
        %v1057 = vunpack.c.0.s8 %v1056
        %v1058 = vlaneseq
        %v1059 = vshrl.u32 %v1058, 7
        %v1060 = vsub.s32 %v1057, %v1059
        %v1061 = vrot.slane %v1009, %v1060
        %v1062 = vcombine.low %v1010, %v1010
        %v1064 = vunpack.c.l.s4 1983009808
        %v1065 = vunpack.c.0.s8 %v1064
        %v1066 = vlaneseq
        %v1067 = vshrl.u32 %v1066, 7
        %v1068 = vsub.s32 %v1065, %v1067
        %v1069 = vrot.slane %v1062, %v1068
        %v1071 = vunpack.c.l.s4 1983009808
        %v1072 = vunpack.c.0.s8 %v1071
        %v1073 = vlaneseq
        %v1074 = vshrl.u32 %v1073, 7
        %v1075 = vsub.s32 %v1072, %v1074
        %v1076 = vrot.slane %v1010, %v1075
        %v1077 = vcombine.low %v1011, %v1011
        %v1079 = vunpack.c.l.s4 1983009808
        %v1080 = vunpack.c.0.s8 %v1079
        %v1081 = vlaneseq
        %v1082 = vshrl.u32 %v1081, 7
        %v1083 = vsub.s32 %v1080, %v1082
        %v1084 = vrot.slane %v1077, %v1083
        %1085 = vrot.lane.b32.xlu0 %v1024, 127
        %v1086 = vpop.permute.xlu0 %1085
        %1087 = vrot.lane.b32.xlu0 %v1031, 127
        %v1088 = vpop.permute.xlu0 %1087
        %1089 = vrot.lane.b32.xlu0 %v1039, 127
        %v1090 = vpop.permute.xlu0 %1089
        %1091 = vrot.lane.b32.xlu0 %v1046, 127
        %v1092 = vpop.permute.xlu0 %1091
        %1093 = vrot.lane.b32.xlu0 %v1054, 127
        %v1094 = vpop.permute.xlu0 %1093
        %1095 = vrot.lane.b32.xlu0 %v1061, 127
        %v1096 = vpop.permute.xlu0 %1095
        %1097 = vrot.lane.b32.xlu0 %v1069, 127
        %v1098 = vpop.permute.xlu0 %1097
        %1099 = vrot.lane.b32.xlu0 %v1076, 127
        %v1100 = vpop.permute.xlu0 %1099
        %1101 = vrot.lane.b32.xlu0 %v1084, 127
        %v1102 = vpop.permute.xlu0 %1101
        %v1103 = vrot.slane %v1086, 4
        %v1104 = vrot.slane %v1088, 4
        %v1105 = vrot.slane %v1090, 4
        %v1106 = vrot.slane %v1092, 4
        %v1107 = vrot.slane %v1094, 4
        %v1108 = vrot.slane %v1096, 4
        %v1109 = vrot.slane %v1098, 4
        %v1110 = vrot.slane %v1100, 4
        %v1111 = vrot.slane %v1102, 4
        %v1112 = vsel %vm395, %v1103, %v1104
        %v1113 = vsel %vm397, %v1086, %v1112
        %v1114 = vsel %vm395, %v1104, %v1105
        %v1115 = vsel %vm397, %v1088, %v1114
        %v1116 = vsel %vm395, %v1105, %v1106
        %v1117 = vsel %vm397, %v1090, %v1116
        %v1118 = vsel %vm395, %v1106, %v1107
        %v1119 = vsel %vm397, %v1092, %v1118
        %v1120 = vsel %vm395, %v1107, %v1108
        %v1121 = vsel %vm397, %v1094, %v1120
        %v1122 = vsel %vm395, %v1108, %v1109
        %v1123 = vsel %vm397, %v1096, %v1122
        %v1124 = vsel %vm395, %v1109, %v1110
        %v1125 = vsel %vm397, %v1098, %v1124
        %v1126 = vsel %vm395, %v1110, %v1111
        %v1127 = vsel %vm397, %v1100, %v1126
        %1136 = vst [vmem:[#allocation2 + $0xc0] sm:$0xcc] %v1113
        %1137 = vst [vmem:[#allocation2 + $0xc8] sm:$0xcc] %v1115
        %1138 = vst [vmem:[#allocation2 + $0xd0] sm:$0xcc] %v1117
        %1139 = vst [vmem:[#allocation2 + $0xd8] sm:$0xcc] %v1119
        %1140 = vst [vmem:[#allocation2 + $0xe0] sm:$0xcc] %v1121
        %1141 = vst [vmem:[#allocation2 + $0xe8] sm:$0xcc] %v1123
        %1142 = vst [vmem:[#allocation2 + $0xf0] sm:$0xcc] %v1125
        %1143 = vst [vmem:[#allocation2 + $0xf8] sm:$0xcc] %v1127
        %v1144 = vld [vmem:[%s182 + $0x4] sm:$0xff]
        %v1145 = vld [vmem:[%s182 + $0xc] sm:$0xff]
        %v1146 = vld [vmem:[%s182 + $0x14] sm:$0xff]
        %v1147 = vld [vmem:[%s182 + $0x1c] sm:$0xff]
        %v1148 = vld [vmem:[%s182 + $0x24] sm:$0x3]
        %v1154 = vcombine.high %v1144, %v1144
        %v1156 = vunpack.c.l.s4 1983009808
        %v1157 = vunpack.c.0.s8 %v1156
        %v1158 = vlaneseq
        %v1159 = vshrl.u32 %v1158, 7
        %v1160 = vsub.s32 %v1157, %v1159
        %v1161 = vrot.slane %v1144, %v1160
        %v1163 = vunpack.c.l.s4 1983009808
        %v1164 = vunpack.c.0.s8 %v1163
        %v1165 = vlaneseq
        %v1166 = vshrl.u32 %v1165, 7
        %v1167 = vsub.s32 %v1164, %v1166
        %v1168 = vrot.slane %v1154, %v1167
        %v1169 = vcombine.high %v1145, %v1145
        %v1171 = vunpack.c.l.s4 1983009808
        %v1172 = vunpack.c.0.s8 %v1171
        %v1173 = vlaneseq
        %v1174 = vshrl.u32 %v1173, 7
        %v1175 = vsub.s32 %v1172, %v1174
        %v1176 = vrot.slane %v1145, %v1175
        %v1178 = vunpack.c.l.s4 1983009808
        %v1179 = vunpack.c.0.s8 %v1178
        %v1180 = vlaneseq
        %v1181 = vshrl.u32 %v1180, 7
        %v1182 = vsub.s32 %v1179, %v1181
        %v1183 = vrot.slane %v1169, %v1182
        %v1184 = vcombine.high %v1146, %v1146
        %v1186 = vunpack.c.l.s4 1983009808
        %v1187 = vunpack.c.0.s8 %v1186
        %v1188 = vlaneseq
        %v1189 = vshrl.u32 %v1188, 7
        %v1190 = vsub.s32 %v1187, %v1189
        %v1191 = vrot.slane %v1146, %v1190
        %v1193 = vunpack.c.l.s4 1983009808
        %v1194 = vunpack.c.0.s8 %v1193
        %v1195 = vlaneseq
        %v1196 = vshrl.u32 %v1195, 7
        %v1197 = vsub.s32 %v1194, %v1196
        %v1198 = vrot.slane %v1184, %v1197
        %v1199 = vcombine.high %v1147, %v1147
        %v1201 = vunpack.c.l.s4 1983009808
        %v1202 = vunpack.c.0.s8 %v1201
        %v1203 = vlaneseq
        %v1204 = vshrl.u32 %v1203, 7
        %v1205 = vsub.s32 %v1202, %v1204
        %v1206 = vrot.slane %v1147, %v1205
        %v1208 = vunpack.c.l.s4 1983009808
        %v1209 = vunpack.c.0.s8 %v1208
        %v1210 = vlaneseq
        %v1211 = vshrl.u32 %v1210, 7
        %v1212 = vsub.s32 %v1209, %v1211
        %v1213 = vrot.slane %v1199, %v1212
        %v1215 = vunpack.c.l.s4 1983009808
        %v1216 = vunpack.c.0.s8 %v1215
        %v1217 = vlaneseq
        %v1218 = vshrl.u32 %v1217, 7
        %v1219 = vsub.s32 %v1216, %v1218
        %v1220 = vrot.slane %v1148, %v1219
        %1221 = vrot.lane.b32.xlu0 %v1161, 126
        %v1222 = vpop.permute.xlu0 %1221
        %1223 = vrot.lane.b32.xlu0 %v1168, 126
        %v1224 = vpop.permute.xlu0 %1223
        %1225 = vrot.lane.b32.xlu0 %v1176, 126
        %v1226 = vpop.permute.xlu0 %1225
        %1227 = vrot.lane.b32.xlu0 %v1183, 126
        %v1228 = vpop.permute.xlu0 %1227
        %1229 = vrot.lane.b32.xlu0 %v1191, 126
        %v1230 = vpop.permute.xlu0 %1229
        %1231 = vrot.lane.b32.xlu0 %v1198, 126
        %v1232 = vpop.permute.xlu0 %1231
        %1233 = vrot.lane.b32.xlu0 %v1206, 126
        %v1234 = vpop.permute.xlu0 %1233
        %1235 = vrot.lane.b32.xlu0 %v1213, 126
        %v1236 = vpop.permute.xlu0 %1235
        %1237 = vrot.lane.b32.xlu0 %v1220, 126
        %v1238 = vpop.permute.xlu0 %1237
        %v1239 = vrot.slane %v1222, 4
        %v1240 = vrot.slane %v1224, 4
        %v1241 = vrot.slane %v1226, 4
        %v1242 = vrot.slane %v1228, 4
        %v1243 = vrot.slane %v1230, 4
        %v1244 = vrot.slane %v1232, 4
        %v1245 = vrot.slane %v1234, 4
        %v1246 = vrot.slane %v1236, 4
        %v1247 = vrot.slane %v1238, 4
        %v1248 = vsel %vm395, %v1239, %v1240
        %v1249 = vsel %vm534, %v1222, %v1248
        %v1250 = vsel %vm395, %v1240, %v1241
        %v1251 = vsel %vm534, %v1224, %v1250
        %v1252 = vsel %vm395, %v1241, %v1242
        %v1253 = vsel %vm534, %v1226, %v1252
        %v1254 = vsel %vm395, %v1242, %v1243
        %v1255 = vsel %vm534, %v1228, %v1254
        %v1256 = vsel %vm395, %v1243, %v1244
        %v1257 = vsel %vm534, %v1230, %v1256
        %v1258 = vsel %vm395, %v1244, %v1245
        %v1259 = vsel %vm534, %v1232, %v1258
        %v1260 = vsel %vm395, %v1245, %v1246
        %v1261 = vsel %vm534, %v1234, %v1260
        %v1262 = vsel %vm395, %v1246, %v1247
        %v1263 = vsel %vm534, %v1236, %v1262
        %1272 = vst [vmem:[#allocation2 + $0x100] sm:$0x33] %v1249
        %1273 = vst [vmem:[#allocation2 + $0x108] sm:$0x33] %v1251
        %1274 = vst [vmem:[#allocation2 + $0x110] sm:$0x33] %v1253
        %1275 = vst [vmem:[#allocation2 + $0x118] sm:$0x33] %v1255
        %1276 = vst [vmem:[#allocation2 + $0x120] sm:$0x33] %v1257
        %1277 = vst [vmem:[#allocation2 + $0x128] sm:$0x33] %v1259
        %1278 = vst [vmem:[#allocation2 + $0x130] sm:$0x33] %v1261
        %1279 = vst [vmem:[#allocation2 + $0x138] sm:$0x33] %v1263
        %v1280 = vld [vmem:[%s1] sm:$0xf]
        %v1281 = vld [vmem:[#allocation2] sm:$0xff]
        %v1282 = vld [vmem:[#allocation2 + $0x8] sm:$0xff]
        %v1283 = vld [vmem:[#allocation2 + $0x10] sm:$0xff]
        %v1284 = vld [vmem:[#allocation2 + $0x18] sm:$0xff]
        %v1285 = vld [vmem:[#allocation2 + $0x20] sm:$0xff]
        %v1286 = vld [vmem:[#allocation2 + $0x28] sm:$0xff]
        %v1287 = vld [vmem:[#allocation2 + $0x30] sm:$0xff]
        %v1288 = vld [vmem:[#allocation2 + $0x38] sm:$0xff]
        %v1289 = vld [vmem:[#allocation2 + $0x40] sm:$0xff]
        %v1290 = vld [vmem:[#allocation2 + $0x48] sm:$0xff]
        %v1291 = vld [vmem:[#allocation2 + $0x50] sm:$0xff]
        %v1292 = vld [vmem:[#allocation2 + $0x58] sm:$0xff]
        %v1293 = vld [vmem:[#allocation2 + $0x60] sm:$0xff]
        %v1294 = vld [vmem:[#allocation2 + $0x68] sm:$0xff]
        %v1295 = vld [vmem:[#allocation2 + $0x70] sm:$0xff]
        %v1296 = vld [vmem:[#allocation2 + $0x78] sm:$0xff]
        %v1297 = vld [vmem:[#allocation2 + $0x80] sm:$0xff]
        %v1298 = vld [vmem:[#allocation2 + $0x88] sm:$0xff]
        %v1299 = vld [vmem:[#allocation2 + $0x90] sm:$0xff]
        %v1300 = vld [vmem:[#allocation2 + $0x98] sm:$0xff]
        %v1301 = vld [vmem:[#allocation2 + $0xa0] sm:$0xff]
        %v1302 = vld [vmem:[#allocation2 + $0xa8] sm:$0xff]
        %v1303 = vld [vmem:[#allocation2 + $0xb0] sm:$0xff]
        %v1304 = vld [vmem:[#allocation2 + $0xb8] sm:$0xff]
        %v1305 = vld [vmem:[#allocation2 + $0xc0] sm:$0xff]
        %v1306 = vld [vmem:[#allocation2 + $0xc8] sm:$0xff]
        %v1307 = vld [vmem:[#allocation2 + $0xd0] sm:$0xff]
        %v1308 = vld [vmem:[#allocation2 + $0xd8] sm:$0xff]
        %v1309 = vld [vmem:[#allocation2 + $0xe0] sm:$0xff]
        %v1310 = vld [vmem:[#allocation2 + $0xe8] sm:$0xff]
        %v1311 = vld [vmem:[#allocation2 + $0xf0] sm:$0xff]
        %v1312 = vld [vmem:[#allocation2 + $0xf8] sm:$0xff]
        %v1313 = vld [vmem:[#allocation2 + $0x100] sm:$0x33]
        %v1314 = vld [vmem:[#allocation2 + $0x108] sm:$0x33]
        %v1315 = vld [vmem:[#allocation2 + $0x110] sm:$0x33]
        %v1316 = vld [vmem:[#allocation2 + $0x118] sm:$0x33]
        %v1317 = vld [vmem:[#allocation2 + $0x120] sm:$0x33]
        %v1318 = vld [vmem:[#allocation2 + $0x128] sm:$0x33]
        %v1319 = vld [vmem:[#allocation2 + $0x130] sm:$0x33]
        %v1320 = vld [vmem:[#allocation2 + $0x138] sm:$0x33]
        %v1321 = vld [vmem:[%s2] sm:$0xff]
        %1323 = vset.pattern.permute.xlu0 0
        %1324 = vperm.xlu0 %1323, %v1321
        %v1325 = vpop.permute.xlu0 %1324
        %v1367 = vunpack.c.l.b16 %v1281
        %v1368 = vunpack.c.h.b16 %v1281
        %v1369 = vunpack.c.l.b16 %v1282
        %v1370 = vunpack.c.h.b16 %v1282
        %v1371 = vunpack.c.l.b16 %v1283
        %v1372 = vunpack.c.h.b16 %v1283
        %v1373 = vunpack.c.l.b16 %v1284
        %v1374 = vunpack.c.h.b16 %v1284
        %v1375 = vunpack.c.l.b16 %v1285
        %v1376 = vunpack.c.h.b16 %v1285
        %v1377 = vunpack.c.l.b16 %v1286
        %v1378 = vunpack.c.h.b16 %v1286
        %v1379 = vunpack.c.l.b16 %v1287
        %v1380 = vunpack.c.h.b16 %v1287
        %v1381 = vunpack.c.l.b16 %v1288
        %v1382 = vunpack.c.h.b16 %v1288
        %v1383 = vunpack.c.l.b16 %v1289
        %v1384 = vunpack.c.h.b16 %v1289
        %v1385 = vunpack.c.l.b16 %v1290
        %v1386 = vunpack.c.h.b16 %v1290
        %v1387 = vunpack.c.l.b16 %v1291
        %v1388 = vunpack.c.h.b16 %v1291
        %v1389 = vunpack.c.l.b16 %v1292
        %v1390 = vunpack.c.h.b16 %v1292
        %v1391 = vunpack.c.l.b16 %v1293
        %v1392 = vunpack.c.h.b16 %v1293
        %v1393 = vunpack.c.l.b16 %v1294
        %v1394 = vunpack.c.h.b16 %v1294
        %v1395 = vunpack.c.l.b16 %v1295
        %v1396 = vunpack.c.h.b16 %v1295
        %v1397 = vunpack.c.l.b16 %v1296
        %v1398 = vunpack.c.h.b16 %v1296
        %v1399 = vunpack.c.l.b16 %v1297
        %v1400 = vunpack.c.h.b16 %v1297
        %v1401 = vunpack.c.l.b16 %v1298
        %v1402 = vunpack.c.h.b16 %v1298
        %v1403 = vunpack.c.l.b16 %v1299
        %v1404 = vunpack.c.h.b16 %v1299
        %v1405 = vunpack.c.l.b16 %v1300
        %v1406 = vunpack.c.h.b16 %v1300
        %v1407 = vunpack.c.l.b16 %v1301
        %v1408 = vunpack.c.h.b16 %v1301
        %v1409 = vunpack.c.l.b16 %v1302
        %v1410 = vunpack.c.h.b16 %v1302
        %v1411 = vunpack.c.l.b16 %v1303
        %v1412 = vunpack.c.h.b16 %v1303
        %v1413 = vunpack.c.l.b16 %v1304
        %v1414 = vunpack.c.h.b16 %v1304
        %v1415 = vunpack.c.l.b16 %v1305
        %v1416 = vunpack.c.h.b16 %v1305
        %v1417 = vunpack.c.l.b16 %v1306
        %v1418 = vunpack.c.h.b16 %v1306
        %v1419 = vunpack.c.l.b16 %v1307
        %v1420 = vunpack.c.h.b16 %v1307
        %v1421 = vunpack.c.l.b16 %v1308
        %v1422 = vunpack.c.h.b16 %v1308
        %v1423 = vunpack.c.l.b16 %v1309
        %v1424 = vunpack.c.h.b16 %v1309
        %v1425 = vunpack.c.l.b16 %v1310
        %v1426 = vunpack.c.h.b16 %v1310
        %v1427 = vunpack.c.l.b16 %v1311
        %v1428 = vunpack.c.h.b16 %v1311
        %v1429 = vunpack.c.l.b16 %v1312
        %v1430 = vunpack.c.h.b16 %v1312
        %v1431 = vunpack.c.l.b16 %v1313
        %v1432 = vunpack.c.h.b16 %v1313
        %v1433 = vunpack.c.l.b16 %v1314
        %v1434 = vunpack.c.h.b16 %v1314
        %v1435 = vunpack.c.l.b16 %v1315
        %v1436 = vunpack.c.h.b16 %v1315
        %v1437 = vunpack.c.l.b16 %v1316
        %v1438 = vunpack.c.h.b16 %v1316
        %v1439 = vunpack.c.l.b16 %v1317
        %v1440 = vunpack.c.h.b16 %v1317
        %v1441 = vunpack.c.l.b16 %v1318
        %v1442 = vunpack.c.h.b16 %v1318
        %v1443 = vunpack.c.l.b16 %v1319
        %v1444 = vunpack.c.h.b16 %v1319
        %v1445 = vunpack.c.l.b16 %v1320
        %v1446 = vunpack.c.h.b16 %v1320
        %v1447 = vpack.c.b16 %v1383, %v1367
        %v1448 = vpack.c.b16 %v1384, %v1368
        %v1449 = vpack.c.b16 %v1385, %v1369
        %v1450 = vpack.c.b16 %v1386, %v1370
        %v1451 = vpack.c.b16 %v1387, %v1371
        %v1452 = vpack.c.b16 %v1388, %v1372
        %v1453 = vpack.c.b16 %v1389, %v1373
        %v1454 = vpack.c.b16 %v1390, %v1374
        %v1455 = vpack.c.b16 %v1391, %v1375
        %v1456 = vpack.c.b16 %v1392, %v1376
        %v1457 = vpack.c.b16 %v1393, %v1377
        %v1458 = vpack.c.b16 %v1394, %v1378
        %v1459 = vpack.c.b16 %v1395, %v1379
        %v1460 = vpack.c.b16 %v1396, %v1380
        %v1461 = vpack.c.b16 %v1397, %v1381
        %v1462 = vpack.c.b16 %v1398, %v1382
        %v1463 = vpack.c.b16 %v1415, %v1399
        %v1464 = vpack.c.b16 %v1416, %v1400
        %v1465 = vpack.c.b16 %v1417, %v1401
        %v1466 = vpack.c.b16 %v1418, %v1402
        %v1467 = vpack.c.b16 %v1419, %v1403
        %v1468 = vpack.c.b16 %v1420, %v1404
        %v1469 = vpack.c.b16 %v1421, %v1405
        %v1470 = vpack.c.b16 %v1422, %v1406
        %v1471 = vpack.c.b16 %v1423, %v1407
        %v1472 = vpack.c.b16 %v1424, %v1408
        %v1473 = vpack.c.b16 %v1425, %v1409
        %v1474 = vpack.c.b16 %v1426, %v1410
        %v1475 = vpack.c.b16 %v1427, %v1411
        %v1476 = vpack.c.b16 %v1428, %v1412
        %v1477 = vpack.c.b16 %v1429, %v1413
        %v1478 = vpack.c.b16 %v1430, %v1414
        %v1479 = vpack.c.b16 %v1431, %v1431
        %v1480 = vpack.c.b16 %v1432, %v1432
        %v1481 = vpack.c.b16 %v1433, %v1433
        %v1482 = vpack.c.b16 %v1434, %v1434
        %v1483 = vpack.c.b16 %v1435, %v1435
        %v1484 = vpack.c.b16 %v1436, %v1436
        %v1485 = vpack.c.b16 %v1437, %v1437
        %v1486 = vpack.c.b16 %v1438, %v1438
        %v1487 = vpack.c.b16 %v1439, %v1439
        %v1488 = vpack.c.b16 %v1440, %v1440
        %v1489 = vpack.c.b16 %v1441, %v1441
        %v1490 = vpack.c.b16 %v1442, %v1442
        %v1491 = vpack.c.b16 %v1443, %v1443
        %v1492 = vpack.c.b16 %v1444, %v1444
        %v1493 = vpack.c.b16 %v1445, %v1445
        %v1494 = vpack.c.b16 %v1446, %v1446
        %vm1527 = vcmask 293888
        %v1529 = vsel %vm1527, %v1280, 0
        %vm1531 = vcmask 1041408
        %v1533 = vsel %vm1531, %v1479, 0
        %v1536 = vsel %vm1531, %v1480, 0
        %v1539 = vsel %vm1531, %v1481, 0
        %v1542 = vsel %vm1531, %v1482, 0
        %v1545 = vsel %vm1531, %v1483, 0
        %v1548 = vsel %vm1531, %v1484, 0
        %v1551 = vsel %vm1531, %v1485, 0
        %v1554 = vsel %vm1531, %v1486, 0
        %v1557 = vsel %vm1531, %v1487, 0
        %v1560 = vsel %vm1531, %v1488, 0
        %v1563 = vsel %vm1531, %v1489, 0
        %v1566 = vsel %vm1531, %v1490, 0
        %v1569 = vsel %vm1531, %v1491, 0
        %v1572 = vsel %vm1531, %v1492, 0
        %v1575 = vsel %vm1531, %v1493, 0
        %v1578 = vsel %vm1531, %v1494, 0
        %1580 = vmatprep.subr.bf16.mxu0 %v1448
        %1581 = vmatpush1.bf16.msra.mxu0 %v1447
        %1582 = vmatprep.subr.bf16.mxu0 %v1464
        %1583 = vmatpush1.bf16.msra.mxu0 %v1463
        %1584 = vmatprep.subr.bf16.mxu0 %v1536
        %1585 = vmatpush1.bf16.msra.mxu0 %v1533
        %1586 = vmatprep.subr.bf16.mxu0 0
        %1587 = vmatpush1.bf16.msra.mxu0 0
        %1588 = vmatprep.subr.bf16.mxu0 0
        %1589 = vmatpush1.bf16.msra.mxu0 0
        %1590 = vmatprep.subr.bf16.mxu0 0
        %1591 = vmatpush1.bf16.msra.mxu0 0
        %1592 = vmatprep.subr.bf16.mxu0 0
        %1593 = vmatpush1.bf16.msra.mxu0 0
        %1594 = vmatprep.subr.bf16.mxu0 0
        %1595 = vmatpush1.bf16.msra.mxu0 0
        %1596 = vmatprep.subr.bf16.mxu0 0
        %1597 = vmatpush1.bf16.msra.mxu0 0
        %1598 = vmatprep.subr.bf16.mxu0 0
        %1599 = vmatpush1.bf16.msra.mxu0 0
        %1600 = vmatprep.subr.bf16.mxu0 0
        %1601 = vmatpush1.bf16.msra.mxu0 0
        %1602 = vmatprep.subr.bf16.mxu0 0
        %1603 = vmatpush1.bf16.msra.mxu0 0
        %1604 = vmatprep.subr.bf16.mxu0 0
        %1605 = vmatpush1.bf16.msra.mxu0 0
        %1606 = vmatprep.subr.bf16.mxu0 0
        %1607 = vmatpush1.bf16.msra.mxu0 0
        %1608 = vmatprep.subr.bf16.mxu0 0
        %1609 = vmatpush1.bf16.msra.mxu0 0
        %1610 = vmatprep.subr.bf16.mxu0 0
        %1611 = vmatpush1.bf16.msra.mxu0 0
        %1612 = vmatprep.mubr.bf16.mxu0 0
        %1613 = vmatmul.mubr.bf16.gmra.mrb[0].mxu0 %v1529
        %v1614 = vpop.f32.mrb[0].mxu0
        %v1615 = vadd.f32 %v1325, %v1614
        %v1616 = vpop.f32.mrb[0].mxu0
        %v1617 = vadd.f32 %v1325, %v1616
        %v1618 = vpop.f32.mrb[0].mxu0
        %v1619 = vpop.f32.mrb[0].mxu0
        %1620 = vdwg.mxu0
        %1621 = vmatprep.subr.bf16.mxu0 %v1450
        %1622 = vmatpush1.bf16.msra.mxu0 %v1449
        %1623 = vmatprep.subr.bf16.mxu0 %v1466
        %1624 = vmatpush1.bf16.msra.mxu0 %v1465
        %1625 = vmatprep.subr.bf16.mxu0 %v1542
        %1626 = vmatpush1.bf16.msra.mxu0 %v1539
        %1627 = vmatprep.subr.bf16.mxu0 0
        %1628 = vmatpush1.bf16.msra.mxu0 0
        %1629 = vmatprep.subr.bf16.mxu0 0
        %1630 = vmatpush1.bf16.msra.mxu0 0
        %1631 = vmatprep.subr.bf16.mxu0 0
        %1632 = vmatpush1.bf16.msra.mxu0 0
        %1633 = vmatprep.subr.bf16.mxu0 0
        %1634 = vmatpush1.bf16.msra.mxu0 0
        %1635 = vmatprep.subr.bf16.mxu0 0
        %1636 = vmatpush1.bf16.msra.mxu0 0
        %1637 = vmatprep.subr.bf16.mxu0 0
        %1638 = vmatpush1.bf16.msra.mxu0 0
        %1639 = vmatprep.subr.bf16.mxu0 0
        %1640 = vmatpush1.bf16.msra.mxu0 0
        %1641 = vmatprep.subr.bf16.mxu0 0
        %1642 = vmatpush1.bf16.msra.mxu0 0
        %1643 = vmatprep.subr.bf16.mxu0 0
        %1644 = vmatpush1.bf16.msra.mxu0 0
        %1645 = vmatprep.subr.bf16.mxu0 0
        %1646 = vmatpush1.bf16.msra.mxu0 0
        %1647 = vmatprep.subr.bf16.mxu0 0
        %1648 = vmatpush1.bf16.msra.mxu0 0
        %1649 = vmatprep.subr.bf16.mxu0 0
        %1650 = vmatpush1.bf16.msra.mxu0 0
        %1651 = vmatprep.subr.bf16.mxu0 0
        %1652 = vmatpush1.bf16.msra.mxu0 0
        %1653 = vmatprep.mubr.bf16.mxu0 0
        %1654 = vmatmul.mubr.bf16.gmra.mrb[0].mxu0 %v1529
        %v1655 = vpop.f32.mrb[0].mxu0
        %v1656 = vadd.f32 %v1325, %v1655
        %v1657 = vpop.f32.mrb[0].mxu0
        %v1658 = vadd.f32 %v1325, %v1657
        %v1659 = vpop.f32.mrb[0].mxu0
        %v1660 = vpop.f32.mrb[0].mxu0
        %1661 = vdwg.mxu0
        %1662 = vmatprep.subr.bf16.mxu0 %v1452
        %1663 = vmatpush1.bf16.msra.mxu0 %v1451
        %1664 = vmatprep.subr.bf16.mxu0 %v1468
        %1665 = vmatpush1.bf16.msra.mxu0 %v1467
        %1666 = vmatprep.subr.bf16.mxu0 %v1548
        %1667 = vmatpush1.bf16.msra.mxu0 %v1545
        %1668 = vmatprep.subr.bf16.mxu0 0
        %1669 = vmatpush1.bf16.msra.mxu0 0
        %1670 = vmatprep.subr.bf16.mxu0 0
        %1671 = vmatpush1.bf16.msra.mxu0 0
        %1672 = vmatprep.subr.bf16.mxu0 0
        %1673 = vmatpush1.bf16.msra.mxu0 0
        %1674 = vmatprep.subr.bf16.mxu0 0
        %1675 = vmatpush1.bf16.msra.mxu0 0
        %1676 = vmatprep.subr.bf16.mxu0 0
        %1677 = vmatpush1.bf16.msra.mxu0 0
        %1678 = vmatprep.subr.bf16.mxu0 0
        %1679 = vmatpush1.bf16.msra.mxu0 0
        %1680 = vmatprep.subr.bf16.mxu0 0
        %1681 = vmatpush1.bf16.msra.mxu0 0
        %1682 = vmatprep.subr.bf16.mxu0 0
        %1683 = vmatpush1.bf16.msra.mxu0 0
        %1684 = vmatprep.subr.bf16.mxu0 0
        %1685 = vmatpush1.bf16.msra.mxu0 0
        %1686 = vmatprep.subr.bf16.mxu0 0
        %1687 = vmatpush1.bf16.msra.mxu0 0
        %1688 = vmatprep.subr.bf16.mxu0 0
        %1689 = vmatpush1.bf16.msra.mxu0 0
        %1690 = vmatprep.subr.bf16.mxu0 0
        %1691 = vmatpush1.bf16.msra.mxu0 0
        %1692 = vmatprep.subr.bf16.mxu0 0
        %1693 = vmatpush1.bf16.msra.mxu0 0
        %1694 = vmatprep.mubr.bf16.mxu0 0
        %1695 = vmatmul.mubr.bf16.gmra.mrb[0].mxu0 %v1529
        %v1696 = vpop.f32.mrb[0].mxu0
        %v1697 = vadd.f32 %v1325, %v1696
        %v1698 = vpop.f32.mrb[0].mxu0
        %v1699 = vadd.f32 %v1325, %v1698
        %v1700 = vpop.f32.mrb[0].mxu0
        %v1701 = vpop.f32.mrb[0].mxu0
        %1702 = vdwg.mxu0
        %1703 = vmatprep.subr.bf16.mxu0 %v1454
        %1704 = vmatpush1.bf16.msra.mxu0 %v1453
        %1705 = vmatprep.subr.bf16.mxu0 %v1470
        %1706 = vmatpush1.bf16.msra.mxu0 %v1469
        %1707 = vmatprep.subr.bf16.mxu0 %v1554
        %1708 = vmatpush1.bf16.msra.mxu0 %v1551
        %1709 = vmatprep.subr.bf16.mxu0 0
        %1710 = vmatpush1.bf16.msra.mxu0 0
        %1711 = vmatprep.subr.bf16.mxu0 0
        %1712 = vmatpush1.bf16.msra.mxu0 0
        %1713 = vmatprep.subr.bf16.mxu0 0
        %1714 = vmatpush1.bf16.msra.mxu0 0
        %1715 = vmatprep.subr.bf16.mxu0 0
        %1716 = vmatpush1.bf16.msra.mxu0 0
        %1717 = vmatprep.subr.bf16.mxu0 0
        %1718 = vmatpush1.bf16.msra.mxu0 0
        %1719 = vmatprep.subr.bf16.mxu0 0
        %1720 = vmatpush1.bf16.msra.mxu0 0
        %1721 = vmatprep.subr.bf16.mxu0 0
        %1722 = vmatpush1.bf16.msra.mxu0 0
        %1723 = vmatprep.subr.bf16.mxu0 0
        %1724 = vmatpush1.bf16.msra.mxu0 0
        %1725 = vmatprep.subr.bf16.mxu0 0
        %1726 = vmatpush1.bf16.msra.mxu0 0
        %1727 = vmatprep.subr.bf16.mxu0 0
        %1728 = vmatpush1.bf16.msra.mxu0 0
        %1729 = vmatprep.subr.bf16.mxu0 0
        %1730 = vmatpush1.bf16.msra.mxu0 0
        %1731 = vmatprep.subr.bf16.mxu0 0
        %1732 = vmatpush1.bf16.msra.mxu0 0
        %1733 = vmatprep.subr.bf16.mxu0 0
        %1734 = vmatpush1.bf16.msra.mxu0 0
        %1735 = vmatprep.mubr.bf16.mxu0 0
        %1736 = vmatmul.mubr.bf16.gmra.mrb[0].mxu0 %v1529
        %v1737 = vpop.f32.mrb[0].mxu0
        %v1738 = vadd.f32 %v1325, %v1737
        %v1739 = vpop.f32.mrb[0].mxu0
        %v1740 = vadd.f32 %v1325, %v1739
        %v1741 = vpop.f32.mrb[0].mxu0
        %v1742 = vpop.f32.mrb[0].mxu0
        %1743 = vdwg.mxu0
        %1744 = vmatprep.subr.bf16.mxu0 %v1456
        %1745 = vmatpush1.bf16.msra.mxu0 %v1455
        %1746 = vmatprep.subr.bf16.mxu0 %v1472
        %1747 = vmatpush1.bf16.msra.mxu0 %v1471
        %1748 = vmatprep.subr.bf16.mxu0 %v1560
        %1749 = vmatpush1.bf16.msra.mxu0 %v1557
        %1750 = vmatprep.subr.bf16.mxu0 0
        %1751 = vmatpush1.bf16.msra.mxu0 0
        %1752 = vmatprep.subr.bf16.mxu0 0
        %1753 = vmatpush1.bf16.msra.mxu0 0
        %1754 = vmatprep.subr.bf16.mxu0 0
        %1755 = vmatpush1.bf16.msra.mxu0 0
        %1756 = vmatprep.subr.bf16.mxu0 0
        %1757 = vmatpush1.bf16.msra.mxu0 0
        %1758 = vmatprep.subr.bf16.mxu0 0
        %1759 = vmatpush1.bf16.msra.mxu0 0
        %1760 = vmatprep.subr.bf16.mxu0 0
        %1761 = vmatpush1.bf16.msra.mxu0 0
        %1762 = vmatprep.subr.bf16.mxu0 0
        %1763 = vmatpush1.bf16.msra.mxu0 0
        %1764 = vmatprep.subr.bf16.mxu0 0
        %1765 = vmatpush1.bf16.msra.mxu0 0
        %1766 = vmatprep.subr.bf16.mxu0 0
        %1767 = vmatpush1.bf16.msra.mxu0 0
        %1768 = vmatprep.subr.bf16.mxu0 0
        %1769 = vmatpush1.bf16.msra.mxu0 0
        %1770 = vmatprep.subr.bf16.mxu0 0
        %1771 = vmatpush1.bf16.msra.mxu0 0
        %1772 = vmatprep.subr.bf16.mxu0 0
        %1773 = vmatpush1.bf16.msra.mxu0 0
        %1774 = vmatprep.subr.bf16.mxu0 0
        %1775 = vmatpush1.bf16.msra.mxu0 0
        %1776 = vmatprep.mubr.bf16.mxu0 0
        %1777 = vmatmul.mubr.bf16.gmra.mrb[0].mxu0 %v1529
        %v1778 = vpop.f32.mrb[0].mxu0
        %v1779 = vadd.f32 %v1325, %v1778
        %v1780 = vpop.f32.mrb[0].mxu0
        %v1781 = vadd.f32 %v1325, %v1780
        %v1782 = vpop.f32.mrb[0].mxu0
        %v1783 = vpop.f32.mrb[0].mxu0
        %1784 = vdwg.mxu0
        %1785 = vmatprep.subr.bf16.mxu0 %v1458
        %1786 = vmatpush1.bf16.msra.mxu0 %v1457
        %1787 = vmatprep.subr.bf16.mxu0 %v1474
        %1788 = vmatpush1.bf16.msra.mxu0 %v1473
        %1789 = vmatprep.subr.bf16.mxu0 %v1566
        %1790 = vmatpush1.bf16.msra.mxu0 %v1563
        %1791 = vmatprep.subr.bf16.mxu0 0
        %1792 = vmatpush1.bf16.msra.mxu0 0
        %1793 = vmatprep.subr.bf16.mxu0 0
        %1794 = vmatpush1.bf16.msra.mxu0 0
        %1795 = vmatprep.subr.bf16.mxu0 0
        %1796 = vmatpush1.bf16.msra.mxu0 0
        %1797 = vmatprep.subr.bf16.mxu0 0
        %1798 = vmatpush1.bf16.msra.mxu0 0
        %1799 = vmatprep.subr.bf16.mxu0 0
        %1800 = vmatpush1.bf16.msra.mxu0 0
        %1801 = vmatprep.subr.bf16.mxu0 0
        %1802 = vmatpush1.bf16.msra.mxu0 0
        %1803 = vmatprep.subr.bf16.mxu0 0
        %1804 = vmatpush1.bf16.msra.mxu0 0
        %1805 = vmatprep.subr.bf16.mxu0 0
        %1806 = vmatpush1.bf16.msra.mxu0 0
        %1807 = vmatprep.subr.bf16.mxu0 0
        %1808 = vmatpush1.bf16.msra.mxu0 0
        %1809 = vmatprep.subr.bf16.mxu0 0
        %1810 = vmatpush1.bf16.msra.mxu0 0
        %1811 = vmatprep.subr.bf16.mxu0 0
        %1812 = vmatpush1.bf16.msra.mxu0 0
        %1813 = vmatprep.subr.bf16.mxu0 0
        %1814 = vmatpush1.bf16.msra.mxu0 0
        %1815 = vmatprep.subr.bf16.mxu0 0
        %1816 = vmatpush1.bf16.msra.mxu0 0
        %1817 = vmatprep.mubr.bf16.mxu0 0
        %1818 = vmatmul.mubr.bf16.gmra.mrb[0].mxu0 %v1529
        %v1819 = vpop.f32.mrb[0].mxu0
        %v1820 = vadd.f32 %v1325, %v1819
        %v1821 = vpop.f32.mrb[0].mxu0
        %v1822 = vadd.f32 %v1325, %v1821
        %v1823 = vpop.f32.mrb[0].mxu0
        %v1824 = vpop.f32.mrb[0].mxu0
        %1825 = vdwg.mxu0
        %1826 = vmatprep.subr.bf16.mxu0 %v1460
        %1827 = vmatpush1.bf16.msra.mxu0 %v1459
        %1828 = vmatprep.subr.bf16.mxu0 %v1476
        %1829 = vmatpush1.bf16.msra.mxu0 %v1475
        %1830 = vmatprep.subr.bf16.mxu0 %v1572
        %1831 = vmatpush1.bf16.msra.mxu0 %v1569
        %1832 = vmatprep.subr.bf16.mxu0 0
        %1833 = vmatpush1.bf16.msra.mxu0 0
        %1834 = vmatprep.subr.bf16.mxu0 0
        %1835 = vmatpush1.bf16.msra.mxu0 0
        %1836 = vmatprep.subr.bf16.mxu0 0
        %1837 = vmatpush1.bf16.msra.mxu0 0
        %1838 = vmatprep.subr.bf16.mxu0 0
        %1839 = vmatpush1.bf16.msra.mxu0 0
        %1840 = vmatprep.subr.bf16.mxu0 0
        %1841 = vmatpush1.bf16.msra.mxu0 0
        %1842 = vmatprep.subr.bf16.mxu0 0
        %1843 = vmatpush1.bf16.msra.mxu0 0
        %1844 = vmatprep.subr.bf16.mxu0 0
        %1845 = vmatpush1.bf16.msra.mxu0 0
        %1846 = vmatprep.subr.bf16.mxu0 0
        %1847 = vmatpush1.bf16.msra.mxu0 0
        %1848 = vmatprep.subr.bf16.mxu0 0
        %1849 = vmatpush1.bf16.msra.mxu0 0
        %1850 = vmatprep.subr.bf16.mxu0 0
        %1851 = vmatpush1.bf16.msra.mxu0 0
        %1852 = vmatprep.subr.bf16.mxu0 0
        %1853 = vmatpush1.bf16.msra.mxu0 0
        %1854 = vmatprep.subr.bf16.mxu0 0
        %1855 = vmatpush1.bf16.msra.mxu0 0
        %1856 = vmatprep.subr.bf16.mxu0 0
        %1857 = vmatpush1.bf16.msra.mxu0 0
        %1858 = vmatprep.mubr.bf16.mxu0 0
        %1859 = vmatmul.mubr.bf16.gmra.mrb[0].mxu0 %v1529
        %v1860 = vpop.f32.mrb[0].mxu0
        %v1861 = vadd.f32 %v1325, %v1860
        %v1862 = vpop.f32.mrb[0].mxu0
        %v1863 = vadd.f32 %v1325, %v1862
        %v1864 = vpop.f32.mrb[0].mxu0
        %v1865 = vpop.f32.mrb[0].mxu0
        %1866 = vdwg.mxu0
        %1867 = vmatprep.subr.bf16.mxu0 %v1462
        %1868 = vmatpush1.bf16.msra.mxu0 %v1461
        %1869 = vmatprep.subr.bf16.mxu0 %v1478
        %1870 = vmatpush1.bf16.msra.mxu0 %v1477
        %1871 = vmatprep.subr.bf16.mxu0 %v1578
        %1872 = vmatpush1.bf16.msra.mxu0 %v1575
        %1873 = vmatprep.subr.bf16.mxu0 0
        %1874 = vmatpush1.bf16.msra.mxu0 0
        %1875 = vmatprep.subr.bf16.mxu0 0
        %1876 = vmatpush1.bf16.msra.mxu0 0
        %1877 = vmatprep.subr.bf16.mxu0 0
        %1878 = vmatpush1.bf16.msra.mxu0 0
        %1879 = vmatprep.subr.bf16.mxu0 0
        %1880 = vmatpush1.bf16.msra.mxu0 0
        %1881 = vmatprep.subr.bf16.mxu0 0
        %1882 = vmatpush1.bf16.msra.mxu0 0
        %1883 = vmatprep.subr.bf16.mxu0 0
        %1884 = vmatpush1.bf16.msra.mxu0 0
        %1885 = vmatprep.subr.bf16.mxu0 0
        %1886 = vmatpush1.bf16.msra.mxu0 0
        %1887 = vmatprep.subr.bf16.mxu0 0
        %1888 = vmatpush1.bf16.msra.mxu0 0
        %1889 = vmatprep.subr.bf16.mxu0 0
        %1890 = vmatpush1.bf16.msra.mxu0 0
        %1891 = vmatprep.subr.bf16.mxu0 0
        %1892 = vmatpush1.bf16.msra.mxu0 0
        %1893 = vmatprep.subr.bf16.mxu0 0
        %1894 = vmatpush1.bf16.msra.mxu0 0
        %1895 = vmatprep.subr.bf16.mxu0 0
        %1896 = vmatpush1.bf16.msra.mxu0 0
        %1897 = vmatprep.subr.bf16.mxu0 0
        %1898 = vmatpush1.bf16.msra.mxu0 0
        %1899 = vmatprep.mubr.bf16.mxu0 0
        %1900 = vmatmul.mubr.bf16.gmra.mrb[0].mxu0 %v1529
        %v1901 = vpop.f32.mrb[0].mxu0
        %v1902 = vadd.f32 %v1325, %v1901
        %v1903 = vpop.f32.mrb[0].mxu0
        %v1904 = vadd.f32 %v1325, %v1903
        %v1905 = vpop.f32.mrb[0].mxu0
        %v1906 = vpop.f32.mrb[0].mxu0
        %1907 = vdwg.mxu0
        %1908 = vst [vmem:[%s204] sm:$0xff] %v1615
        %1909 = vst [vmem:[%s204 + $0x8] sm:$0xff] %v1617
        %1910 = vst [vmem:[%s204 + $0x10] sm:$0xff] %v1656
        %1911 = vst [vmem:[%s204 + $0x18] sm:$0xff] %v1658
        %1912 = vst [vmem:[%s204 + $0x20] sm:$0xff] %v1697
        %1913 = vst [vmem:[%s204 + $0x28] sm:$0xff] %v1699
        %1914 = vst [vmem:[%s204 + $0x30] sm:$0xff] %v1738
        %1915 = vst [vmem:[%s204 + $0x38] sm:$0xff] %v1740
        %1916 = vst [vmem:[%s204 + $0x40] sm:$0xff] %v1779
        %1917 = vst [vmem:[%s204 + $0x48] sm:$0xff] %v1781
        %1918 = vst [vmem:[%s204 + $0x50] sm:$0xff] %v1820
        %1919 = vst [vmem:[%s204 + $0x58] sm:$0xff] %v1822
        %1920 = vst [vmem:[%s204 + $0x60] sm:$0xff] %v1861
        %1921 = vst [vmem:[%s204 + $0x68] sm:$0xff] %v1863
        %1922 = vst [vmem:[%s204 + $0x70] sm:$0xff] %v1902
        %1923 = vst [vmem:[%s204 + $0x78] sm:$0xff] %v1904
        %s1924 = sand.u32 %s112, 1
        %s1925 = scalar_lea.sflag [#allocation5], %s1924
        %s1926 = sand.u32 %s112, 1
        %s1927 = smul.addr %s1926, 128
        %s1928 = scalar_lea.vmem [#allocation6], %s1927
        // Predicated region
        $region37: #{tpu_custom_call.1} parent=31 // pred_check
          %p1929 = pneg %p122
        $region38: #{tpu_custom_call.1} parent=31 // pred_check_branch
          %1931 = sbr.rel (%p1929) target = $region40
        $region39: #{tpu_custom_call.1} parent=31 // pred_region
          %s1933 = ssub.s32 2048, 2048
          %1934 = vsyncadd %s1925, %s1933
          %s1935 = smul.addr %s25, 16
          %s1936 = smul.addr %s24, 32
          %s1937 = sadd.s32 %s1935, %s1936
          %s1938 = smul.addr %s1937, 128
          %s1939 = scalar_lea.hbm %s3, %s1938
          %s1941 = sshll.u32 %s1928, 4
          %s1942 = int_to_ptr.vmem [resolvable:$true] %s1941
          %1944 = dma.vmem_to_hbm [thread:$0]  %s1942, 2048, %s1939, %s1925
        $region40: #{tpu_custom_call.1} parent=31 // pred_fallthru
          _
      $region32: #{tpu_custom_call.1} parent=5 // pred_fallthru
        _
      %p1945 = scmp.le.s32.totalorder 2, %s15
      // Predicated region
      $region41: #{tpu_custom_call.1} parent=5 // pred_check
        %p1946 = pneg %p1945
      $region42: #{tpu_custom_call.1} parent=5 // pred_check_branch
        %1948 = sbr.rel (%p1946) target = $region44
      $region43: #{tpu_custom_call.1} parent=5 // pred_region
        %s1949 = ssub.s32 %s15, 2
        // Predicated region
        $region45: #{tpu_custom_call.1} parent=43 // pred_check
          %p1950 = pneg %p128
        $region46: #{tpu_custom_call.1} parent=43 // pred_check_branch
          %1952 = sbr.rel (%p1950) target = $region48
        $region47: #{tpu_custom_call.1} parent=43 // pred_region
          %s1953 = sand.u32 %s113, 1
          %s1954 = scalar_lea.sflag [#allocation5], %s1953
          %s1955 = sand.u32 %s113, 1
          %s1956 = smul.addr %s1955, 128
          %s1957 = scalar_lea.vmem [#allocation6], %s1956
          %1958 = dma.done %s1954, 2048
        $region48: #{tpu_custom_call.1} parent=43 // pred_fallthru
          _
      $region44: #{tpu_custom_call.1} parent=5 // pred_fallthru
        _
    $region6: #{tpu_custom_call.1} parent=1 // loop_footer
      %s19 = sadd.s32 1, %s15
    $region7: #{tpu_custom_call.1} parent=1 // loop_footer_branch
      %14 = sbr.rel target = $region3
    $region8: #{tpu_custom_call.1} parent=1 // loop_exit
      _
    %1959 = vsyncpa [#allocation4], 1
    %s1960 = scalar_lea.sflag [#allocation4], 1
    %1961 = vsyncpa %s1960, 1
    %1962 = vsyncpa [#allocation5], 1
    %s1963 = scalar_lea.sflag [#allocation5], 1
    %1964 = vsyncpa %s1963, 1

</llo_original>
